<compile_context>
chip_gen: v6e
topology: v6e:2x2x1
jax: 0.10.0
libtpu: 0.0.40
codegen_flags: <defaults>
</compile_context>

<pallas_src>
import functools

import jax
import jax.numpy as jnp
import numpy as np
from jax import lax
from jax.experimental import pallas as pl
from jax.experimental.pallas import tpu as pltpu

BN_EPS = 1e-5
_LANE = 128
_SUBLANE = 8
_VMEM_LIMIT_BYTES = 48 << 20          # explicit scoped-VMEM limit (v5e default is 16 MiB)
_TARGET_BLOCK_BYTES = 3 << 20         # f32 activation-block target per grid step


def _round_up(x, m):
    return (x + m - 1) // m * m


# --------------------------------------------------------------------------- #
# In-kernel helpers
# --------------------------------------------------------------------------- #
def _row_masks(rows, l, l_pad):
    """Boundary masks from an in-kernel iota (no HBM mask inputs).

    pos   : position within the (padded) sequence for each row of the block
    kl/kr : whether the left / right conv tap exists for that output row
    valid : whether the row is a real (non-pad) sequence position
    """
    row = lax.broadcasted_iota(jnp.int32, (rows, 1), 0)
    pos = row % l_pad
    kl = pos != 0
    kr = pos != (l - 1)
    valid = pos < l
    return kl, kr, valid


def _conv3_taps(h, kl, kr, w_ref, c_pad):
    """kernel_size=3, padding=1 conv as THREE accumulating bf16 MXU matmuls.

    Per-tap weight slices (K = C_pad each) instead of a (rows, 3C) concat LHS:
    no 1.5x-activation bf16 slab in VMEM, and MXU is <10% utilized so the
    shorter-K cadence costs nothing.  Shifts use pltpu.roll (XLU slot);
    wrap-around / cross-sequence rows are killed by kl/kr.  Conv bias omitted:
    it cancels exactly through the train-mode BatchNorm that follows.
    """
    rows = h.shape[0]
    center = h.astype(jnp.bfloat16)
    left = jnp.where(kl, pltpu.roll(h, 1, axis=0), 0.0).astype(jnp.bfloat16)
    # shift by rows-1 == shift by -1 (right neighbor), kept non-negative.
    right = jnp.where(kr, pltpu.roll(h, rows - 1, axis=0), 0.0).astype(jnp.bfloat16)
    acc = jnp.dot(center, w_ref[c_pad:2 * c_pad, :],
                  preferred_element_type=jnp.float32)
    acc += jnp.dot(left, w_ref[0:c_pad, :], preferred_element_type=jnp.float32)
    acc += jnp.dot(right, w_ref[2 * c_pad:3 * c_pad, :],
                   preferred_element_type=jnp.float32)
    return acc


def _write_stats(stats_ref, h):
    """Per-tile partial BN statistics: row 0 = sum(h), row 1 = sum(h*h)."""
    c = h.shape[1]
    s = jnp.sum(h, axis=0, keepdims=True)
    ss = jnp.sum(h * h, axis=0, keepdims=True)
    stats_ref[...] = jnp.concatenate(
        [s, ss, jnp.zeros((_SUBLANE - 2, c), jnp.float32)], axis=0)


# --------------------------------------------------------------------------- #
# Kernels
# --------------------------------------------------------------------------- #
def _stats1_kernel(x_ref, w1_ref, stats_ref, *, l, l_pad, c_pad):
    """Pass 1: conv1 for BN1 statistics only (h1 never hits HBM)."""
    x = x_ref[...].astype(jnp.float32)               # (rows, C_pad)
    kl, kr, valid = _row_masks(x.shape[0], l, l_pad)
    h1 = _conv3_taps(x, kl, kr, w1_ref, c_pad)
    h1 = jnp.where(valid, h1, 0.0)                   # keep pad rows out of stats
    _write_stats(stats_ref, h1)


def _conv1_bn_relu_conv2_kernel(x_ref, sc1_ref, sh1_ref, w1_ref, w2_ref,
                                h2_ref, stats_ref, *, l, l_pad, c_pad):
    """Pass 2: recompute conv1, BN1 (precomputed affine) + ReLU, conv2, stats2."""
    x = x_ref[...].astype(jnp.float32)
    kl, kr, valid = _row_masks(x.shape[0], l, l_pad)
    h1 = _conv3_taps(x, kl, kr, w1_ref, c_pad)
    # Pad-row garbage in `a` never leaks into valid outputs: the kl/kr masks
    # kill any tap that crosses a sequence/pad boundary.
    a = jnp.maximum(h1 * sc1_ref[...] + sh1_ref[...], 0.0)
    h2 = _conv3_taps(a, kl, kr, w2_ref, c_pad)
    h2 = jnp.where(valid, h2, 0.0)
    h2_ref[...] = h2.astype(jnp.bfloat16)            # bf16 HBM intermediate
    _write_stats(stats_ref, h2)


def _bn_residual_kernel(h2_ref, x_ref, sc_ref, sh_ref, o_ref):
    """Pass 3: BN2 + residual add + ReLU (pad rows/channels sliced away by wrapper)."""
    o_ref[...] = jnp.maximum(
        h2_ref[...].astype(jnp.float32) * sc_ref[...] + sh_ref[...]
        + x_ref[...].astype(jnp.float32), 0.0)


# --------------------------------------------------------------------------- #
# Host-side glue
# --------------------------------------------------------------------------- #
def _pick_tile_n(n, l_pad, c_pad, target_bytes=_TARGET_BLOCK_BYTES):
    """Batch-tile choice: biggest block under the target, but always >=2 tiles.

    >=2 grid tiles (when N >= 2) keeps both v7x TensorCores busy via the
    "parallel" grid axis; the ~3 MiB f32 block target keeps the pass-2 working
    set (~6-8x the block, incl. double buffers) comfortably under the 48 MiB
    scoped-VMEM limit on every generation.
    """
    per_seq = l_pad * c_pad * 4
    t = max(1, min(n, target_bytes // max(per_seq, 1)))
    while n % t:
        t -= 1
    if t == n and n > 1:          # force >= 2 tiles for megacore sharding
        t = n // 2
        while n % t:
            t -= 1
    return t
    # TODO(synk): for very long single sequences (l_pad*c_pad block itself
    # exceeding the VMEM budget), add halo tiling along L instead of batch.


def _fused_conv_weight(w, c, c_pad):
    """PyTorch Conv1d weight (Cout, Cin, 3) -> (3*C_pad, C_pad) bf16.

    Taps stacked [left | center | right] along the leading axis; the kernel
    statically slices one (C_pad, C_pad) tap weight per matmul.
    """
    w = jnp.transpose(w, (2, 1, 0))                          # (3, Cin, Cout)
    w = jnp.pad(w, ((0, 0), (0, c_pad - c), (0, c_pad - c)))
    return w.reshape(3 * c_pad, c_pad).astype(jnp.bfloat16)


def _bn_affine(stats, count, gamma, beta, c_pad):
    """Combine per-tile partial sums -> per-channel (scale, shift): y = h*scale + shift."""
    st = stats.reshape(-1, _SUBLANE, c_pad)
    s = jnp.sum(st[:, 0, :], axis=0)
    ss = jnp.sum(st[:, 1, :], axis=0)
    mean = s / count
    var = jnp.maximum(ss / count - mean * mean, 0.0)         # one-pass, biased (train mode)
    scale = gamma * lax.rsqrt(var + BN_EPS)
    shift = beta - mean * scale
    return scale.reshape(1, c_pad), shift.reshape(1, c_pad)


def residual_block_pallas(x_ncl, params):
    """x_ncl: (N, C, L) float32, PyTorch Conv1d layout.  Returns (N, C, L) float32."""
    n, c, l = x_ncl.shape
    c_pad = _round_up(c, _LANE)
    l_pad = _round_up(l, _SUBLANE)
    tile_n = _pick_tile_n(n, l_pad, c_pad)
    num_tiles = n // tile_n
    rows = tile_n * l_pad
    count = float(n * l)
    # Crude guard against a single-sequence block blowing the VMEM budget.
    assert rows * c_pad * 4 * 8 <= _VMEM_LIMIT_BYTES, (
        "activation block too large for VMEM; needs L-halo tiling")

    # (N, C, L) -> zero-padded channel-last bf16 slab (N*L_pad, C_pad): channels
    # on the lane axis (multiple of 128 -> unmasked stores / full MXU tiles).
    # bf16 halves HBM traffic for the 3 reads of x; conv math uses bf16 operands
    # anyway, only the residual add loses a little precision.
    # TODO(synk): if real C << 128, keep the surrounding model in (N, L, C) and
    # compact-C so this pad/transpose round trip (c_pad/C traffic amplification)
    # is not paid on every block.
    x_nlc = jnp.transpose(x_ncl, (0, 2, 1))
    x_nlc = jnp.pad(x_nlc, ((0, 0), (0, l_pad - l), (0, c_pad - c)))
    x2d = x_nlc.reshape(n * l_pad, c_pad).astype(jnp.bfloat16)

    w1 = _fused_conv_weight(params["w1"], c, c_pad)
    w2 = _fused_conv_weight(params["w2"], c, c_pad)
    # Conv biases b1/b2 intentionally dropped (exactly cancel through train-mode BN).
    pad_c = (0, c_pad - c)
    g1 = jnp.pad(params["g1"], pad_c)
    bt1 = jnp.pad(params["bt1"], pad_c)
    g2 = jnp.pad(params["g2"], pad_c)
    bt2 = jnp.pad(params["bt2"], pad_c)

    act_spec = pl.BlockSpec((rows, c_pad), lambda i: (i, 0))
    w_spec = pl.BlockSpec((3 * c_pad, c_pad), lambda i: (0, 0))
    vec_spec = pl.BlockSpec((1, c_pad), lambda i: (0, 0))
    stats_spec = pl.BlockSpec((_SUBLANE, c_pad), lambda i: (i, 0))
    h2_shape = jax.ShapeDtypeStruct((n * l_pad, c_pad), jnp.bfloat16)
    out_shape = jax.ShapeDtypeStruct((n * l_pad, c_pad), jnp.float32)
    stats_shape = jax.ShapeDtypeStruct((num_tiles * _SUBLANE, c_pad), jnp.float32)
    cparams = pltpu.CompilerParams(
        dimension_semantics=("parallel",),
        vmem_limit_bytes=_VMEM_LIMIT_BYTES)

    # Pass 1: conv1 -> per-tile partial BN1 stats (no activation writeback).
    st1 = pl.pallas_call(
        functools.partial(_stats1_kernel, l=l, l_pad=l_pad, c_pad=c_pad),
        grid=(num_tiles,),
        in_specs=[act_spec, w_spec],
        out_specs=stats_spec,
        out_shape=stats_shape,
        compiler_params=cparams,
    )(x2d, w1)
    sc1, sh1 = _bn_affine(st1, count, g1, bt1, c_pad)

    # Pass 2: recompute conv1 + BN1 + ReLU + conv2 (+ per-tile partial BN2 stats).
    h2, st2 = pl.pallas_call(
        functools.partial(_conv1_bn_relu_conv2_kernel, l=l, l_pad=l_pad, c_pad=c_pad),
        grid=(num_tiles,),
        in_specs=[act_spec, vec_spec, vec_spec, w_spec, w_spec],
        out_specs=(act_spec, stats_spec),
        out_shape=(h2_shape, stats_shape),
        compiler_params=cparams,
    )(x2d, sc1, sh1, w1, w2)
    sc2, sh2 = _bn_affine(st2, count, g2, bt2, c_pad)

    # Pass 3: BN2 + residual + ReLU.
    out2d = pl.pallas_call(
        _bn_residual_kernel,
        grid=(num_tiles,),
        in_specs=[act_spec, act_spec, vec_spec, vec_spec],
        out_specs=act_spec,
        out_shape=out_shape,
        compiler_params=cparams,
    )(h2, x2d, sc2, sh2)

    out = out2d.reshape(n, l_pad, c_pad)[:, :l, :c]
    return jnp.transpose(out, (0, 2, 1))


# --------------------------------------------------------------------------- #
# Pure-JAX reference (mirrors the PyTorch forward, train-mode BN, with biases)
# --------------------------------------------------------------------------- #
def residual_block_ref(x, p):
    def conv(h, w, b):
        y = lax.conv_general_dilated(
            h, w, window_strides=(1,), padding=((1, 1),),
            dimension_numbers=("NCH", "OIH", "NCH"))
        return y + b[None, :, None]

    def bn(h, g, bt):
        mean = h.mean(axis=(0, 2), keepdims=True)
        var = ((h - mean) ** 2).mean(axis=(0, 2), keepdims=True)
        return (h - mean) / jnp.sqrt(var + BN_EPS) * g[None, :, None] + bt[None, :, None]

    out = jnp.maximum(bn(conv(x, p["w1"], p["b1"]), p["g1"], p["bt1"]), 0.0)
    out = bn(conv(out, p["w2"], p["b2"]), p["g2"], p["bt2"]) + x
    return jnp.maximum(out, 0.0)


def init_params(key, c):
    """Deterministic init matching nn.Conv1d / nn.BatchNorm1d shapes (in==out==c)."""
    k1, k2, k3, k4 = jax.random.split(key, 4)
    bound = 1.0 / np.sqrt(c * 3)
    return {
        "w1": jax.random.uniform(k1, (c, c, 3), jnp.float32, -bound, bound),
        "b1": jax.random.uniform(k2, (c,), jnp.float32, -bound, bound),
        "g1": jnp.ones((c,), jnp.float32),
        "bt1": jnp.zeros((c,), jnp.float32),
        "w2": jax.random.uniform(k3, (c, c, 3), jnp.float32, -bound, bound),
        "b2": jax.random.uniform(k4, (c,), jnp.float32, -bound, bound),
        "g2": jnp.ones((c,), jnp.float32),
        "bt2": jnp.zeros((c,), jnp.float32),
    }


if __name__ == "__main__":
    key = jax.random.PRNGKey(0)
    kx, kp = jax.random.split(key)

    N, C, L = 2, 8, 16                    # (batch, channels, length), PyTorch NCL
    x = jax.random.normal(kx, (N, C, L), jnp.float32)
    params = init_params(kp, C)

    out = jax.block_until_ready(jax.jit(residual_block_pallas)(x, params))
    ref = jax.block_until_ready(residual_block_ref(x, params))

    assert out.shape == (N, C, L)
    # bf16 matmul operands / bf16 HBM intermediates (f32 accumulation) -> looser
    # tolerance than a pure-f32 comparison; BN normalization amplifies rounding.
    max_err = float(jnp.max(jnp.abs(out - ref)))
    assert max_err < 5e-2, f"mismatch vs reference: {max_err}"
    print("KERNEL_OK")
</pallas_src>

<mosaic_0001>
module attributes {stable_mosaic.version = 11 : i64} {
  func.func @_bn_residual_kernel(%arg0: i32, %arg1: memref<16x128xbf16, #tpu.memory_space<vmem>>, %arg2: memref<16x128xbf16, #tpu.memory_space<vmem>>, %arg3: memref<1x128xf32, #tpu.memory_space<vmem>>, %arg4: memref<1x128xf32, #tpu.memory_space<vmem>>, %arg5: memref<16x128xf32, #tpu.memory_space<vmem>>) attributes {dimension_semantics = [#tpu.dimension_semantics<parallel>], iteration_bounds = array<i64: 2>, scalar_prefetch = 0 : i64, scratch_operands = 0 : i64, tpu.core_type = #tpu.core_type<tc>, window_params = [{transform_indices = @transform_0, window_bounds = array<i64: 16, 128>}, {transform_indices = @transform_1, window_bounds = array<i64: 16, 128>}, {pipeline_mode = #tpu.pipeline_mode<synchronous>, transform_indices = @transform_2, window_bounds = array<i64: 1, 128>}, {pipeline_mode = #tpu.pipeline_mode<synchronous>, transform_indices = @transform_3, window_bounds = array<i64: 1, 128>}, {transform_indices = @transform_4, window_bounds = array<i64: 16, 128>}]} {
    %c0 = arith.constant 0 : index
    %c0_0 = arith.constant 0 : index
    %0 = vector.load %arg1[%c0, %c0_0] : memref<16x128xbf16, #tpu.memory_space<vmem>>, vector<16x128xbf16>
    %1 = arith.extf %0 : vector<16x128xbf16> to vector<16x128xf32>
    %c0_1 = arith.constant 0 : index
    %c0_2 = arith.constant 0 : index
    %2 = vector.load %arg3[%c0_1, %c0_2] : memref<1x128xf32, #tpu.memory_space<vmem>>, vector<1x128xf32>
    %3 = vector.broadcast %2 : vector<1x128xf32> to vector<16x128xf32>
    %4 = arith.mulf %1, %3 : vector<16x128xf32>
    %c0_3 = arith.constant 0 : index
    %c0_4 = arith.constant 0 : index
    %5 = vector.load %arg4[%c0_3, %c0_4] : memref<1x128xf32, #tpu.memory_space<vmem>>, vector<1x128xf32>
    %6 = vector.broadcast %5 : vector<1x128xf32> to vector<16x128xf32>
    %7 = arith.addf %4, %6 : vector<16x128xf32>
    %c0_5 = arith.constant 0 : index
    %c0_6 = arith.constant 0 : index
    %8 = vector.load %arg2[%c0_5, %c0_6] : memref<16x128xbf16, #tpu.memory_space<vmem>>, vector<16x128xbf16>
    %9 = arith.extf %8 : vector<16x128xbf16> to vector<16x128xf32>
    %10 = arith.addf %7, %9 : vector<16x128xf32>
    %cst = arith.constant 0.000000e+00 : f32
    %11 = vector.broadcast %cst : f32 to vector<16x128xf32>
    %12 = arith.maximumf %10, %11 : vector<16x128xf32>
    %c0_7 = arith.constant 0 : index
    %c0_8 = arith.constant 0 : index
    %13 = vector.load %arg5[%c0_7, %c0_8] : memref<16x128xf32, #tpu.memory_space<vmem>>, vector<16x128xf32>
    tpu.vector_store %arg5[%c0_7, %c0_8], %12 {strides = array<i32>} : memref<16x128xf32, #tpu.memory_space<vmem>>, vector<16x128xf32>,
    return
  }
  func.func @transform_0(%arg0: i32) -> (i32, i32) {
    %c0_i32 = arith.constant 0 : i32
    %c0_i32_0 = arith.constant 0 : i32
    return %arg0, %c0_i32 : i32, i32
  }
  func.func @transform_1(%arg0: i32) -> (i32, i32) {
    %c0_i32 = arith.constant 0 : i32
    %c0_i32_0 = arith.constant 0 : i32
    return %arg0, %c0_i32 : i32, i32
  }
  func.func @transform_2(%arg0: i32) -> (i32, i32) {
    %c0_i32 = arith.constant 0 : i32
    %c0_i32_0 = arith.constant 0 : i32
    %c0_i32_1 = arith.constant 0 : i32
    return %c0_i32, %c0_i32_0 : i32, i32
  }
  func.func @transform_3(%arg0: i32) -> (i32, i32) {
    %c0_i32 = arith.constant 0 : i32
    %c0_i32_0 = arith.constant 0 : i32
    %c0_i32_1 = arith.constant 0 : i32
    return %c0_i32, %c0_i32_0 : i32, i32
  }
  func.func @transform_4(%arg0: i32) -> (i32, i32) {
    %c0_i32 = arith.constant 0 : i32
    %c0_i32_0 = arith.constant 0 : i32
    return %arg0, %c0_i32 : i32, i32
  }
}

module attributes {stable_mosaic.version = 11 : i64} {
  func.func @_conv1_bn_relu_conv2_kernel(%arg0: i32, %arg1: memref<16x128xbf16, #tpu.memory_space<vmem>>, %arg2: memref<1x128xf32, #tpu.memory_space<vmem>>, %arg3: memref<1x128xf32, #tpu.memory_space<vmem>>, %arg4: memref<384x128xbf16, #tpu.memory_space<vmem>>, %arg5: memref<384x128xbf16, #tpu.memory_space<vmem>>, %arg6: memref<16x128xbf16, #tpu.memory_space<vmem>>, %arg7: memref<8x128xf32, #tpu.memory_space<vmem>>) attributes {dimension_semantics = [#tpu.dimension_semantics<parallel>], iteration_bounds = array<i64: 2>, scalar_prefetch = 0 : i64, scratch_operands = 0 : i64, tpu.core_type = #tpu.core_type<tc>, window_params = [{transform_indices = @transform_0, window_bounds = array<i64: 16, 128>}, {pipeline_mode = #tpu.pipeline_mode<synchronous>, transform_indices = @transform_1, window_bounds = array<i64: 1, 128>}, {pipeline_mode = #tpu.pipeline_mode<synchronous>, transform_indices = @transform_2, window_bounds = array<i64: 1, 128>}, {pipeline_mode = #tpu.pipeline_mode<synchronous>, transform_indices = @transform_3, window_bounds = array<i64: 384, 128>}, {pipeline_mode = #tpu.pipeline_mode<synchronous>, transform_indices = @transform_4, window_bounds = array<i64: 384, 128>}, {transform_indices = @transform_5, window_bounds = array<i64: 16, 128>}, {transform_indices = @transform_6, window_bounds = array<i64: 8, 128>}]} {
    %c0 = arith.constant 0 : index
    %c0_0 = arith.constant 0 : index
    %0 = vector.load %arg1[%c0, %c0_0] : memref<16x128xbf16, #tpu.memory_space<vmem>>, vector<16x128xbf16>
    %1 = arith.extf %0 : vector<16x128xbf16> to vector<16x128xf32>
    %2 = tpu.iota {dimensions = array<i32: 0>} : vector<16x1xi32>
    %c16_i32 = arith.constant 16 : i32
    %c0_i32 = arith.constant 0 : i32
    %3 = arith.cmpi eq, %c16_i32, %c0_i32 : i32
    %c1_i32 = arith.constant 1 : i32
    %4 = arith.select %3, %c1_i32, %c16_i32 : i32
    %5 = vector.broadcast %4 : i32 to vector<16x1xi32>
    %6 = arith.remsi %2, %5 : vector<16x1xi32>
    %c0_i32_1 = arith.constant 0 : i32
    %7 = vector.broadcast %c0_i32_1 : i32 to vector<16x1xi32>
    %8 = arith.cmpi ne, %6, %7 : vector<16x1xi32>
    %c0_i32_2 = arith.constant 0 : i32
    %9 = vector.broadcast %c0_i32_2 : i32 to vector<16x1xi32>
    %10 = arith.cmpi slt, %6, %9 : vector<16x1xi32>
    %c0_i32_3 = arith.constant 0 : i32
    %11 = arith.cmpi slt, %4, %c0_i32_3 : i32
    %12 = vector.broadcast %11 : i1 to vector<16x1xi1>
    %13 = vector.broadcast %12 : vector<16x1xi1> to vector<16x1xi1>
    %14 = arith.xori %10, %13 : vector<16x1xi1>
    %15 = arith.andi %14, %8 : vector<16x1xi1>
    %16 = vector.broadcast %4 : i32 to vector<16x1xi32>
    %17 = arith.addi %6, %16 : vector<16x1xi32>
    %18 = arith.select %15, %17, %6 : vector<16x1xi1>, vector<16x1xi32>
    %c0_i32_4 = arith.constant 0 : i32
    %19 = vector.broadcast %c0_i32_4 : i32 to vector<16x1xi32>
    %20 = arith.cmpi ne, %18, %19 : vector<16x1xi32>
    %c15_i32 = arith.constant 15 : i32
    %21 = vector.broadcast %c15_i32 : i32 to vector<16x1xi32>
    %22 = arith.cmpi ne, %18, %21 : vector<16x1xi32>
    %c16_i32_5 = arith.constant 16 : i32
    %23 = vector.broadcast %c16_i32_5 : i32 to vector<16x1xi32>
    %24 = arith.cmpi slt, %18, %23 : vector<16x1xi32>
    %25 = arith.truncf %1 : vector<16x128xf32> to vector<16x128xbf16>
    %c1_i32_6 = arith.constant 1 : i32
    %26 = tpu.dynamic_rotate %1 by %c1_i32_6 dim 0 : vector<16x128xf32>, i32 -> vector<16x128xf32>
    %cst = arith.constant 0.000000e+00 : f32
    %27 = vector.shape_cast %20 : vector<16x1xi1> to vector<16x1xi1>
    %28 = vector.broadcast %27 : vector<16x1xi1> to vector<16x128xi1>
    %29 = vector.broadcast %cst : f32 to vector<16x128xf32>
    %30 = arith.select %28, %26, %29 : vector<16x128xi1>, vector<16x128xf32>
    %31 = arith.truncf %30 : vector<16x128xf32> to vector<16x128xbf16>
    %c15_i32_7 = arith.constant 15 : i32
    %32 = tpu.dynamic_rotate %1 by %c15_i32_7 dim 0 : vector<16x128xf32>, i32 -> vector<16x128xf32>
    %cst_8 = arith.constant 0.000000e+00 : f32
    %33 = vector.shape_cast %22 : vector<16x1xi1> to vector<16x1xi1>
    %34 = vector.broadcast %33 : vector<16x1xi1> to vector<16x128xi1>
    %35 = vector.broadcast %cst_8 : f32 to vector<16x128xf32>
    %36 = arith.select %34, %32, %35 : vector<16x128xi1>, vector<16x128xf32>
    %37 = arith.truncf %36 : vector<16x128xf32> to vector<16x128xbf16>
    %c128 = arith.constant 128 : index
    %c0_9 = arith.constant 0 : index
    %38 = vector.load %arg4[%c128, %c0_9] : memref<384x128xbf16, #tpu.memory_space<vmem>>, vector<128x128xbf16>
    %cst_10 = arith.constant dense<0.000000e+00> : vector<16x128xf32>
    %39 = tpu.matmul %25, %38, %cst_10 {dimension_numbers = #tpu.dot_dimension_numbers<[1], [0], [0], [1], [0, 0, 1, 1], [], []>} : vector<16x128xbf16>, vector<128x128xbf16>, vector<16x128xf32> -> vector<16x128xf32>
    %c0_11 = arith.constant 0 : index
    %c0_12 = arith.constant 0 : index
    %40 = vector.load %arg4[%c0_11, %c0_12] : memref<384x128xbf16, #tpu.memory_space<vmem>>, vector<128x128xbf16>
    %cst_13 = arith.constant dense<0.000000e+00> : vector<16x128xf32>
    %41 = tpu.matmul %31, %40, %cst_13 {dimension_numbers = #tpu.dot_dimension_numbers<[1], [0], [0], [1], [0, 0, 1, 1], [], []>} : vector<16x128xbf16>, vector<128x128xbf16>, vector<16x128xf32> -> vector<16x128xf32>
    %42 = arith.addf %39, %41 : vector<16x128xf32>
    %c256 = arith.constant 256 : index
    %c0_14 = arith.constant 0 : index
    %43 = vector.load %arg4[%c256, %c0_14] : memref<384x128xbf16, #tpu.memory_space<vmem>>, vector<128x128xbf16>
    %cst_15 = arith.constant dense<0.000000e+00> : vector<16x128xf32>
    %44 = tpu.matmul %37, %43, %cst_15 {dimension_numbers = #tpu.dot_dimension_numbers<[1], [0], [0], [1], [0, 0, 1, 1], [], []>} : vector<16x128xbf16>, vector<128x128xbf16>, vector<16x128xf32> -> vector<16x128xf32>
    %45 = arith.addf %42, %44 : vector<16x128xf32>
    %c0_16 = arith.constant 0 : index
    %c0_17 = arith.constant 0 : index
    %46 = vector.load %arg2[%c0_16, %c0_17] : memref<1x128xf32, #tpu.memory_space<vmem>>, vector<1x128xf32>
    %47 = vector.broadcast %46 : vector<1x128xf32> to vector<16x128xf32>
    %48 = arith.mulf %45, %47 : vector<16x128xf32>
    %c0_18 = arith.constant 0 : index
    %c0_19 = arith.constant 0 : index
    %49 = vector.load %arg3[%c0_18, %c0_19] : memref<1x128xf32, #tpu.memory_space<vmem>>, vector<1x128xf32>
    %50 = vector.broadcast %49 : vector<1x128xf32> to vector<16x128xf32>
    %51 = arith.addf %48, %50 : vector<16x128xf32>
    %cst_20 = arith.constant 0.000000e+00 : f32
    %52 = vector.broadcast %cst_20 : f32 to vector<16x128xf32>
    %53 = arith.maximumf %51, %52 : vector<16x128xf32>
    %54 = arith.truncf %53 : vector<16x128xf32> to vector<16x128xbf16>
    %c1_i32_21 = arith.constant 1 : i32
    %55 = tpu.dynamic_rotate %53 by %c1_i32_21 dim 0 : vector<16x128xf32>, i32 -> vector<16x128xf32>
    %cst_22 = arith.constant 0.000000e+00 : f32
    %56 = vector.shape_cast %20 : vector<16x1xi1> to vector<16x1xi1>
    %57 = vector.broadcast %56 : vector<16x1xi1> to vector<16x128xi1>
    %58 = vector.broadcast %cst_22 : f32 to vector<16x128xf32>
    %59 = arith.select %57, %55, %58 : vector<16x128xi1>, vector<16x128xf32>
    %60 = arith.truncf %59 : vector<16x128xf32> to vector<16x128xbf16>
    %c15_i32_23 = arith.constant 15 : i32
    %61 = tpu.dynamic_rotate %53 by %c15_i32_23 dim 0 : vector<16x128xf32>, i32 -> vector<16x128xf32>
    %cst_24 = arith.constant 0.000000e+00 : f32
    %62 = vector.shape_cast %22 : vector<16x1xi1> to vector<16x1xi1>
    %63 = vector.broadcast %62 : vector<16x1xi1> to vector<16x128xi1>
    %64 = vector.broadcast %cst_24 : f32 to vector<16x128xf32>
    %65 = arith.select %63, %61, %64 : vector<16x128xi1>, vector<16x128xf32>
    %66 = arith.truncf %65 : vector<16x128xf32> to vector<16x128xbf16>
    %c128_25 = arith.constant 128 : index
    %c0_26 = arith.constant 0 : index
    %67 = vector.load %arg5[%c128_25, %c0_26] : memref<384x128xbf16, #tpu.memory_space<vmem>>, vector<128x128xbf16>
    %cst_27 = arith.constant dense<0.000000e+00> : vector<16x128xf32>
    %68 = tpu.matmul %54, %67, %cst_27 {dimension_numbers = #tpu.dot_dimension_numbers<[1], [0], [0], [1], [0, 0, 1, 1], [], []>} : vector<16x128xbf16>, vector<128x128xbf16>, vector<16x128xf32> -> vector<16x128xf32>
    %c0_28 = arith.constant 0 : index
    %c0_29 = arith.constant 0 : index
    %69 = vector.load %arg5[%c0_28, %c0_29] : memref<384x128xbf16, #tpu.memory_space<vmem>>, vector<128x128xbf16>
    %cst_30 = arith.constant dense<0.000000e+00> : vector<16x128xf32>
    %70 = tpu.matmul %60, %69, %cst_30 {dimension_numbers = #tpu.dot_dimension_numbers<[1], [0], [0], [1], [0, 0, 1, 1], [], []>} : vector<16x128xbf16>, vector<128x128xbf16>, vector<16x128xf32> -> vector<16x128xf32>
    %71 = arith.addf %68, %70 : vector<16x128xf32>
    %c256_31 = arith.constant 256 : index
    %c0_32 = arith.constant 0 : index
    %72 = vector.load %arg5[%c256_31, %c0_32] : memref<384x128xbf16, #tpu.memory_space<vmem>>, vector<128x128xbf16>
    %cst_33 = arith.constant dense<0.000000e+00> : vector<16x128xf32>
    %73 = tpu.matmul %66, %72, %cst_33 {dimension_numbers = #tpu.dot_dimension_numbers<[1], [0], [0], [1], [0, 0, 1, 1], [], []>} : vector<16x128xbf16>, vector<128x128xbf16>, vector<16x128xf32> -> vector<16x128xf32>
    %74 = arith.addf %71, %73 : vector<16x128xf32>
    %cst_34 = arith.constant 0.000000e+00 : f32
    %75 = vector.shape_cast %24 : vector<16x1xi1> to vector<16x1xi1>
    %76 = vector.broadcast %75 : vector<16x1xi1> to vector<16x128xi1>
    %77 = vector.broadcast %cst_34 : f32 to vector<16x128xf32>
    %78 = arith.select %76, %74, %77 : vector<16x128xi1>, vector<16x128xf32>
    %79 = arith.truncf %78 : vector<16x128xf32> to vector<16x128xbf16>
    %c0_35 = arith.constant 0 : index
    %c0_36 = arith.constant 0 : index
    %80 = vector.load %arg6[%c0_35, %c0_36] : memref<16x128xbf16, #tpu.memory_space<vmem>>, vector<16x128xbf16>
    tpu.vector_store %arg6[%c0_35, %c0_36], %79 {strides = array<i32>} : memref<16x128xbf16, #tpu.memory_space<vmem>>, vector<16x128xbf16>,
    %cst_37 = arith.constant dense<0.000000e+00> : vector<128xf32>
    %81 = vector.multi_reduction <add>, %78, %cst_37 [0] : vector<16x128xf32> to vector<128xf32>
    %82 = vector.shape_cast %81 : vector<128xf32> to vector<1x128xf32>
    %83 = arith.mulf %78, %78 : vector<16x128xf32>
    %cst_38 = arith.constant dense<0.000000e+00> : vector<128xf32>
    %84 = vector.multi_reduction <add>, %83, %cst_38 [0] : vector<16x128xf32> to vector<128xf32>
    %85 = vector.shape_cast %84 : vector<128xf32> to vector<1x128xf32>
    %cst_39 = arith.constant 0.000000e+00 : f32
    %86 = vector.broadcast %cst_39 : f32 to vector<6x128xf32>
    %87 = tpu.concatenate %82, %85, %86 in 0 : vector<1x128xf32>, vector<1x128xf32>, vector<6x128xf32> -> vector<8x128xf32>
    %c0_40 = arith.constant 0 : index
    %c0_41 = arith.constant 0 : index
    %88 = vector.load %arg7[%c0_40, %c0_41] : memref<8x128xf32, #tpu.memory_space<vmem>>, vector<8x128xf32>
    tpu.vector_store %arg7[%c0_40, %c0_41], %87 {strides = array<i32>} : memref<8x128xf32, #tpu.memory_space<vmem>>, vector<8x128xf32>,
    return
  }
  func.func @transform_0(%arg0: i32) -> (i32, i32) {
    %c0_i32 = arith.constant 0 : i32
    %c0_i32_0 = arith.constant 0 : i32
    return %arg0, %c0_i32 : i32, i32
  }
  func.func @transform_1(%arg0: i32) -> (i32, i32) {
    %c0_i32 = arith.constant 0 : i32
    %c0_i32_0 = arith.constant 0 : i32
    %c0_i32_1 = arith.constant 0 : i32
    return %c0_i32, %c0_i32_0 : i32, i32
  }
  func.func @transform_2(%arg0: i32) -> (i32, i32) {
    %c0_i32 = arith.constant 0 : i32
    %c0_i32_0 = arith.constant 0 : i32
    %c0_i32_1 = arith.constant 0 : i32
    return %c0_i32, %c0_i32_0 : i32, i32
  }
  func.func @transform_3(%arg0: i32) -> (i32, i32) {
    %c0_i32 = arith.constant 0 : i32
    %c0_i32_0 = arith.constant 0 : i32
    %c0_i32_1 = arith.constant 0 : i32
    return %c0_i32, %c0_i32_0 : i32, i32
  }
  func.func @transform_4(%arg0: i32) -> (i32, i32) {
    %c0_i32 = arith.constant 0 : i32
    %c0_i32_0 = arith.constant 0 : i32
    %c0_i32_1 = arith.constant 0 : i32
    return %c0_i32, %c0_i32_0 : i32, i32
  }
  func.func @transform_5(%arg0: i32) -> (i32, i32) {
    %c0_i32 = arith.constant 0 : i32
    %c0_i32_0 = arith.constant 0 : i32
    return %arg0, %c0_i32 : i32, i32
  }
  func.func @transform_6(%arg0: i32) -> (i32, i32) {
    %c0_i32 = arith.constant 0 : i32
    %c0_i32_0 = arith.constant 0 : i32
    return %arg0, %c0_i32 : i32, i32
  }
}

module attributes {stable_mosaic.version = 11 : i64} {
  func.func @_stats1_kernel(%arg0: i32, %arg1: memref<16x128xbf16, #tpu.memory_space<vmem>>, %arg2: memref<384x128xbf16, #tpu.memory_space<vmem>>, %arg3: memref<8x128xf32, #tpu.memory_space<vmem>>) attributes {dimension_semantics = [#tpu.dimension_semantics<parallel>], iteration_bounds = array<i64: 2>, scalar_prefetch = 0 : i64, scratch_operands = 0 : i64, tpu.core_type = #tpu.core_type<tc>, window_params = [{transform_indices = @transform_0, window_bounds = array<i64: 16, 128>}, {pipeline_mode = #tpu.pipeline_mode<synchronous>, transform_indices = @transform_1, window_bounds = array<i64: 384, 128>}, {transform_indices = @transform_2, window_bounds = array<i64: 8, 128>}]} {
    %c0 = arith.constant 0 : index
    %c0_0 = arith.constant 0 : index
    %0 = vector.load %arg1[%c0, %c0_0] : memref<16x128xbf16, #tpu.memory_space<vmem>>, vector<16x128xbf16>
    %1 = arith.extf %0 : vector<16x128xbf16> to vector<16x128xf32>
    %2 = tpu.iota {dimensions = array<i32: 0>} : vector<16x1xi32>
    %c16_i32 = arith.constant 16 : i32
    %c0_i32 = arith.constant 0 : i32
    %3 = arith.cmpi eq, %c16_i32, %c0_i32 : i32
    %c1_i32 = arith.constant 1 : i32
    %4 = arith.select %3, %c1_i32, %c16_i32 : i32
    %5 = vector.broadcast %4 : i32 to vector<16x1xi32>
    %6 = arith.remsi %2, %5 : vector<16x1xi32>
    %c0_i32_1 = arith.constant 0 : i32
    %7 = vector.broadcast %c0_i32_1 : i32 to vector<16x1xi32>
    %8 = arith.cmpi ne, %6, %7 : vector<16x1xi32>
    %c0_i32_2 = arith.constant 0 : i32
    %9 = vector.broadcast %c0_i32_2 : i32 to vector<16x1xi32>
    %10 = arith.cmpi slt, %6, %9 : vector<16x1xi32>
    %c0_i32_3 = arith.constant 0 : i32
    %11 = arith.cmpi slt, %4, %c0_i32_3 : i32
    %12 = vector.broadcast %11 : i1 to vector<16x1xi1>
    %13 = vector.broadcast %12 : vector<16x1xi1> to vector<16x1xi1>
    %14 = arith.xori %10, %13 : vector<16x1xi1>
    %15 = arith.andi %14, %8 : vector<16x1xi1>
    %16 = vector.broadcast %4 : i32 to vector<16x1xi32>
    %17 = arith.addi %6, %16 : vector<16x1xi32>
    %18 = arith.select %15, %17, %6 : vector<16x1xi1>, vector<16x1xi32>
    %c0_i32_4 = arith.constant 0 : i32
    %19 = vector.broadcast %c0_i32_4 : i32 to vector<16x1xi32>
    %20 = arith.cmpi ne, %18, %19 : vector<16x1xi32>
    %c15_i32 = arith.constant 15 : i32
    %21 = vector.broadcast %c15_i32 : i32 to vector<16x1xi32>
    %22 = arith.cmpi ne, %18, %21 : vector<16x1xi32>
    %c16_i32_5 = arith.constant 16 : i32
    %23 = vector.broadcast %c16_i32_5 : i32 to vector<16x1xi32>
    %24 = arith.cmpi slt, %18, %23 : vector<16x1xi32>
    %25 = arith.truncf %1 : vector<16x128xf32> to vector<16x128xbf16>
    %c1_i32_6 = arith.constant 1 : i32
    %26 = tpu.dynamic_rotate %1 by %c1_i32_6 dim 0 : vector<16x128xf32>, i32 -> vector<16x128xf32>
    %cst = arith.constant 0.000000e+00 : f32
    %27 = vector.shape_cast %20 : vector<16x1xi1> to vector<16x1xi1>
    %28 = vector.broadcast %27 : vector<16x1xi1> to vector<16x128xi1>
    %29 = vector.broadcast %cst : f32 to vector<16x128xf32>
    %30 = arith.select %28, %26, %29 : vector<16x128xi1>, vector<16x128xf32>
    %31 = arith.truncf %30 : vector<16x128xf32> to vector<16x128xbf16>
    %c15_i32_7 = arith.constant 15 : i32
    %32 = tpu.dynamic_rotate %1 by %c15_i32_7 dim 0 : vector<16x128xf32>, i32 -> vector<16x128xf32>
    %cst_8 = arith.constant 0.000000e+00 : f32
    %33 = vector.shape_cast %22 : vector<16x1xi1> to vector<16x1xi1>
    %34 = vector.broadcast %33 : vector<16x1xi1> to vector<16x128xi1>
    %35 = vector.broadcast %cst_8 : f32 to vector<16x128xf32>
    %36 = arith.select %34, %32, %35 : vector<16x128xi1>, vector<16x128xf32>
    %37 = arith.truncf %36 : vector<16x128xf32> to vector<16x128xbf16>
    %c128 = arith.constant 128 : index
    %c0_9 = arith.constant 0 : index
    %38 = vector.load %arg2[%c128, %c0_9] : memref<384x128xbf16, #tpu.memory_space<vmem>>, vector<128x128xbf16>
    %cst_10 = arith.constant dense<0.000000e+00> : vector<16x128xf32>
    %39 = tpu.matmul %25, %38, %cst_10 {dimension_numbers = #tpu.dot_dimension_numbers<[1], [0], [0], [1], [0, 0, 1, 1], [], []>} : vector<16x128xbf16>, vector<128x128xbf16>, vector<16x128xf32> -> vector<16x128xf32>
    %c0_11 = arith.constant 0 : index
    %c0_12 = arith.constant 0 : index
    %40 = vector.load %arg2[%c0_11, %c0_12] : memref<384x128xbf16, #tpu.memory_space<vmem>>, vector<128x128xbf16>
    %cst_13 = arith.constant dense<0.000000e+00> : vector<16x128xf32>
    %41 = tpu.matmul %31, %40, %cst_13 {dimension_numbers = #tpu.dot_dimension_numbers<[1], [0], [0], [1], [0, 0, 1, 1], [], []>} : vector<16x128xbf16>, vector<128x128xbf16>, vector<16x128xf32> -> vector<16x128xf32>
    %42 = arith.addf %39, %41 : vector<16x128xf32>
    %c256 = arith.constant 256 : index
    %c0_14 = arith.constant 0 : index
    %43 = vector.load %arg2[%c256, %c0_14] : memref<384x128xbf16, #tpu.memory_space<vmem>>, vector<128x128xbf16>
    %cst_15 = arith.constant dense<0.000000e+00> : vector<16x128xf32>
    %44 = tpu.matmul %37, %43, %cst_15 {dimension_numbers = #tpu.dot_dimension_numbers<[1], [0], [0], [1], [0, 0, 1, 1], [], []>} : vector<16x128xbf16>, vector<128x128xbf16>, vector<16x128xf32> -> vector<16x128xf32>
    %45 = arith.addf %42, %44 : vector<16x128xf32>
    %cst_16 = arith.constant 0.000000e+00 : f32
    %46 = vector.shape_cast %24 : vector<16x1xi1> to vector<16x1xi1>
    %47 = vector.broadcast %46 : vector<16x1xi1> to vector<16x128xi1>
    %48 = vector.broadcast %cst_16 : f32 to vector<16x128xf32>
    %49 = arith.select %47, %45, %48 : vector<16x128xi1>, vector<16x128xf32>
    %cst_17 = arith.constant dense<0.000000e+00> : vector<128xf32>
    %50 = vector.multi_reduction <add>, %49, %cst_17 [0] : vector<16x128xf32> to vector<128xf32>
    %51 = vector.shape_cast %50 : vector<128xf32> to vector<1x128xf32>
    %52 = arith.mulf %49, %49 : vector<16x128xf32>
    %cst_18 = arith.constant dense<0.000000e+00> : vector<128xf32>
    %53 = vector.multi_reduction <add>, %52, %cst_18 [0] : vector<16x128xf32> to vector<128xf32>
    %54 = vector.shape_cast %53 : vector<128xf32> to vector<1x128xf32>
    %cst_19 = arith.constant 0.000000e+00 : f32
    %55 = vector.broadcast %cst_19 : f32 to vector<6x128xf32>
    %56 = tpu.concatenate %51, %54, %55 in 0 : vector<1x128xf32>, vector<1x128xf32>, vector<6x128xf32> -> vector<8x128xf32>
    %c0_20 = arith.constant 0 : index
    %c0_21 = arith.constant 0 : index
    %57 = vector.load %arg3[%c0_20, %c0_21] : memref<8x128xf32, #tpu.memory_space<vmem>>, vector<8x128xf32>
    tpu.vector_store %arg3[%c0_20, %c0_21], %56 {strides = array<i32>} : memref<8x128xf32, #tpu.memory_space<vmem>>, vector<8x128xf32>,
    return
  }
  func.func @transform_0(%arg0: i32) -> (i32, i32) {
    %c0_i32 = arith.constant 0 : i32
    %c0_i32_0 = arith.constant 0 : i32
    return %arg0, %c0_i32 : i32, i32
  }
  func.func @transform_1(%arg0: i32) -> (i32, i32) {
    %c0_i32 = arith.constant 0 : i32
    %c0_i32_0 = arith.constant 0 : i32
    %c0_i32_1 = arith.constant 0 : i32
    return %c0_i32, %c0_i32_0 : i32, i32
  }
  func.func @transform_2(%arg0: i32) -> (i32, i32) {
    %c0_i32 = arith.constant 0 : i32
    %c0_i32_0 = arith.constant 0 : i32
    return %arg0, %c0_i32 : i32, i32
  }
}

</mosaic_0001>

<llo_original>
// kernel: residual_block_pallas.5
$region0: #{residual_block_pallas.5}
  #allocation0 [shape = 'u32[]', space=smem, size = 0x4, offset = 0x4, fixed_abs, tag = 'smem constant byte address 0x4 - core index']
  #allocation1 [shape = 'u32[144,128]{1,0:T(1,128)}', space=vmem, size = 0x12000, scoped, tag = 'internal scratch']
  %s0 = inlined_call_operand.vmem [shape: bf16[32,128], index: 0, kind: input, shape index: {}]
  %s1 = inlined_call_operand.vmem [shape: bf16[32,128], index: 1, kind: input, shape index: {}]
  %s2 = inlined_call_operand.vmem [shape: f32[1,128], index: 2, kind: input, shape index: {}]
  %s3 = inlined_call_operand.vmem [shape: f32[1,128], index: 3, kind: input, shape index: {}]
  %s4 = inlined_call_operand.vmem [shape: f32[32,128], index: 4, kind: output, shape index: {}]
  %s5 = sld [smem:[#allocation0]]
  $region49: #{residual_block_pallas.5} parent=0
    _
  %s7 = ssub.s32 1, %s5
  %s8 = scalar_select 0, %s7, %s5
  loop: start=0, step=1, limit=4
  $region2: #{residual_block_pallas.5} parent=0 // loop_pre_header
    _
  $region3: #{residual_block_pallas.5} parent=0 // loop_header
    %s10 = sphi 0, %s14
    %p11 = scmp.ge.s32.totalorder %s10, 4
    %s20 = sphi 0, %s22
    %s23 = sphi 0, %s20
    %s24 = sphi 0, %s23
    %s40 = sphi 0, %s24
    %s46 = sphi 0, %s48
    %s49 = sphi 0, %s46
    %s50 = sphi 0, %s49
    %s66 = sphi 0, %s50
    %s70 = sphi 0, %s70
    %s72 = sphi 0, %s70
    %s73 = sphi 0, %s72
    %s87 = sphi 0, %s73
    %s91 = sphi 0, %s91
    %s93 = sphi 0, %s91
    %s94 = sphi 0, %s93
    %s108 = sphi 0, %s94
    %s114 = sphi 0, %s116
    %s117 = sphi 0, %s114
    %s118 = sphi 0, %s117
    %s134 = sphi 0, %s118
  $region4: #{residual_block_pallas.5} parent=0 // loop_header_branch
    %13 = sbr.rel (%p11) target = $region8
  $region5: #{residual_block_pallas.5} parent=0 // loop_body
    %s15 = ssub.s32 %s10, 1
    %s16 = ssub.s32 %s10, 2
    %s17 = sadd.s32 %s10, 1
    %s18 = ssub.s32 %s10, %s17
    %p19 = scmp.eq.s32.totalorder %s18, 0
    %s21 = sadd.s32 %s20, 1
    %s22 = scalar_select %p19, %s20, %s21
    %p25 = pneg %p19
    %p26 = scmp.eq.s32.totalorder %s10, 1
    %p27 = por %p25, %p26
    %p28 = scmp.ne.s32.totalorder %s20, %s23
    %p29 = scmp.eq.s32.totalorder %s10, 0
    %p30 = por %p28, %p29
    %p31 = scmp.ne.s32.totalorder %s20, %s23
    %p32 = scmp.eq.s32.totalorder %s15, 1
    %p33 = por %p31, %p32
    %p34 = scmp.ne.s32.totalorder %s23, %s24
    %p35 = scmp.eq.s32.totalorder %s15, 0
    %p36 = por %p34, %p35
    %p37 = scmp.ne.s32.totalorder %s23, %s24
    %p38 = scmp.eq.s32.totalorder %s16, 1
    %p39 = por %p37, %p38
    %p41 = scmp.ne.s32.totalorder %s24, %s40
    %p42 = scmp.eq.s32.totalorder %s16, 0
    %p43 = por %p41, %p42
    %s44 = ssub.s32 %s10, %s17
    %p45 = scmp.eq.s32.totalorder %s44, 0
    %s47 = sadd.s32 %s46, 1
    %s48 = scalar_select %p45, %s46, %s47
    %p51 = pneg %p45
    %p52 = scmp.eq.s32.totalorder %s10, 1
    %p53 = por %p51, %p52
    %p54 = scmp.ne.s32.totalorder %s46, %s49
    %p55 = scmp.eq.s32.totalorder %s10, 0
    %p56 = por %p54, %p55
    %p57 = scmp.ne.s32.totalorder %s46, %s49
    %p58 = scmp.eq.s32.totalorder %s15, 1
    %p59 = por %p57, %p58
    %p60 = scmp.ne.s32.totalorder %s49, %s50
    %p61 = scmp.eq.s32.totalorder %s15, 0
    %p62 = por %p60, %p61
    %p63 = scmp.ne.s32.totalorder %s49, %s50
    %p64 = scmp.eq.s32.totalorder %s16, 1
    %p65 = por %p63, %p64
    %p67 = scmp.ne.s32.totalorder %s50, %s66
    %p68 = scmp.eq.s32.totalorder %s16, 0
    %p69 = por %p67, %p68
    %s71 = sadd.s32 %s70, 1
    %p74 = scmp.eq.s32.totalorder %s10, 1
    %p75 = scmp.ne.s32.totalorder %s70, %s72
    %p76 = scmp.eq.s32.totalorder %s10, 0
    %p77 = por %p75, %p76
    %p78 = scmp.ne.s32.totalorder %s70, %s72
    %p79 = scmp.eq.s32.totalorder %s15, 1
    %p80 = por %p78, %p79
    %p81 = scmp.ne.s32.totalorder %s72, %s73
    %p82 = scmp.eq.s32.totalorder %s15, 0
    %p83 = por %p81, %p82
    %p84 = scmp.ne.s32.totalorder %s72, %s73
    %p85 = scmp.eq.s32.totalorder %s16, 1
    %p86 = por %p84, %p85
    %p88 = scmp.ne.s32.totalorder %s73, %s87
    %p89 = scmp.eq.s32.totalorder %s16, 0
    %p90 = por %p88, %p89
    %s92 = sadd.s32 %s91, 1
    %p95 = scmp.eq.s32.totalorder %s10, 1
    %p96 = scmp.ne.s32.totalorder %s91, %s93
    %p97 = scmp.eq.s32.totalorder %s10, 0
    %p98 = por %p96, %p97
    %p99 = scmp.ne.s32.totalorder %s91, %s93
    %p100 = scmp.eq.s32.totalorder %s15, 1
    %p101 = por %p99, %p100
    %p102 = scmp.ne.s32.totalorder %s93, %s94
    %p103 = scmp.eq.s32.totalorder %s15, 0
    %p104 = por %p102, %p103
    %p105 = scmp.ne.s32.totalorder %s93, %s94
    %p106 = scmp.eq.s32.totalorder %s16, 1
    %p107 = por %p105, %p106
    %p109 = scmp.ne.s32.totalorder %s94, %s108
    %p110 = scmp.eq.s32.totalorder %s16, 0
    %p111 = por %p109, %p110
    %s112 = ssub.s32 %s10, %s17
    %p113 = scmp.eq.s32.totalorder %s112, 0
    %s115 = sadd.s32 %s114, 1
    %s116 = scalar_select %p113, %s114, %s115
    %p119 = pneg %p113
    %p120 = scmp.eq.s32.totalorder %s10, 1
    %p121 = por %p119, %p120
    %p122 = scmp.ne.s32.totalorder %s114, %s117
    %p123 = scmp.eq.s32.totalorder %s10, 0
    %p124 = por %p122, %p123
    %p125 = scmp.ne.s32.totalorder %s114, %s117
    %p126 = scmp.eq.s32.totalorder %s15, 1
    %p127 = por %p125, %p126
    %p128 = scmp.ne.s32.totalorder %s117, %s118
    %p129 = scmp.eq.s32.totalorder %s15, 0
    %p130 = por %p128, %p129
    %p131 = scmp.ne.s32.totalorder %s117, %s118
    %p132 = scmp.eq.s32.totalorder %s16, 1
    %p133 = por %p131, %p132
    %p135 = scmp.ne.s32.totalorder %s118, %s134
    %p136 = scmp.eq.s32.totalorder %s16, 0
    %p137 = por %p135, %p136
    %p138 = scmp.le.s32.totalorder 1, %s10
    %p139 = scmp.lt.s32.totalorder %s10, 3
    %p140 = pnand %p138, %p139
    %p141 = pneg %p140
    // Predicated region
    $region9: #{residual_block_pallas.5} parent=5 // pred_check
      _
    $region10: #{residual_block_pallas.5} parent=5 // pred_check_branch
      %143 = sbr.rel (%p140) target = $region12
    $region11: #{residual_block_pallas.5} parent=5 // pred_region
      %s144 = ssub.s32 %s10, 1
      // Predicated region
      $region13: #{residual_block_pallas.5} parent=11 // pred_check
        %p145 = pneg %p83
      $region14: #{residual_block_pallas.5} parent=11 // pred_check_branch
        %147 = sbr.rel (%p145) target = $region16
      $region15: #{residual_block_pallas.5} parent=11 // pred_region
        _
      $region16: #{residual_block_pallas.5} parent=11 // pred_fallthru
        _
      // Predicated region
      $region17: #{residual_block_pallas.5} parent=11 // pred_check
        %p148 = pneg %p104
      $region18: #{residual_block_pallas.5} parent=11 // pred_check_branch
        %150 = sbr.rel (%p148) target = $region20
      $region19: #{residual_block_pallas.5} parent=11 // pred_region
        _
      $region20: #{residual_block_pallas.5} parent=11 // pred_fallthru
        _
    $region12: #{residual_block_pallas.5} parent=5 // pred_fallthru
      _
    %p151 = scmp.lt.s32.totalorder %s10, 2
    // Predicated region
    $region21: #{residual_block_pallas.5} parent=5 // pred_check
      %p152 = pneg %p151
    $region22: #{residual_block_pallas.5} parent=5 // pred_check_branch
      %154 = sbr.rel (%p152) target = $region24
    $region23: #{residual_block_pallas.5} parent=5 // pred_region
      // Predicated region
      $region25: #{residual_block_pallas.5} parent=23 // pred_check
        %p155 = pneg %p30
      $region26: #{residual_block_pallas.5} parent=23 // pred_check_branch
        %157 = sbr.rel (%p155) target = $region28
      $region27: #{residual_block_pallas.5} parent=23 // pred_region
        %s158 = smul.u32 2, %s10
        %p159 = scmp.lt.s32.totalorder %s158, 3
        %s160 = scalar_select %p159, %s158, 3
        %s161 = smul.addr %s160, 4
        %s162 = scalar_lea.vmem %s0, %s161
        %s163 = smul.u32 2, %s10
      $region28: #{residual_block_pallas.5} parent=23 // pred_fallthru
        _
      // Predicated region
      $region29: #{residual_block_pallas.5} parent=23 // pred_check
        %p164 = pneg %p56
      $region30: #{residual_block_pallas.5} parent=23 // pred_check_branch
        %166 = sbr.rel (%p164) target = $region32
      $region31: #{residual_block_pallas.5} parent=23 // pred_region
        %s167 = smul.u32 2, %s10
        %p168 = scmp.lt.s32.totalorder %s167, 3
        %s169 = scalar_select %p168, %s167, 3
        %s170 = smul.addr %s169, 4
        %s171 = scalar_lea.vmem %s1, %s170
        %s172 = smul.u32 2, %s10
      $region32: #{residual_block_pallas.5} parent=23 // pred_fallthru
        _
    $region24: #{residual_block_pallas.5} parent=5 // pred_fallthru
      _
    %p173 = scmp.le.s32.totalorder 1, %s10
    %p174 = scmp.lt.s32.totalorder %s10, 3
    %p175 = pnand %p173, %p174
    %p176 = pneg %p175
    // Predicated region
    $region33: #{residual_block_pallas.5} parent=5 // pred_check
      _
    $region34: #{residual_block_pallas.5} parent=5 // pred_check_branch
      %178 = sbr.rel (%p175) target = $region36
    $region35: #{residual_block_pallas.5} parent=5 // pred_region
      %s179 = ssub.s32 %s10, 1
      %s180 = smul.u32 2, %s15
      %p181 = scmp.lt.s32.totalorder %s180, 3
      %s182 = scalar_select %p181, %s180, 3
      %s183 = smul.addr %s182, 4
      %s184 = scalar_lea.vmem %s0, %s183
      %p185 = pneg %p36
      %p186 = pneg %p33
      %s187 = smul.u32 2, %s15
      %p188 = scmp.lt.s32.totalorder %s187, 3
      %s189 = scalar_select %p188, %s187, 3
      %s190 = smul.addr %s189, 4
      %s191 = scalar_lea.vmem %s1, %s190
      %p192 = pneg %p62
      %p193 = pneg %p59
      %p194 = pneg %p83
      %p195 = pneg %p80
      %p196 = pneg %p104
      %p197 = pneg %p101
      %p198 = pneg %p130
      %p199 = pneg %p127
      %s200 = smul.u32 2, %s15
      %p201 = scmp.lt.s32.totalorder %s200, 3
      %s202 = scalar_select %p201, %s200, 3
      %s203 = smul.addr %s202, 8
      %s204 = scalar_lea.vmem %s4, %s203
      %s205 = smul.u32 2, %s15
      %p206 = scmp.lt.s32.totalorder %s205, 3
      %s207 = scalar_select %p206, %s205, 3
      %s208 = smul.addr %s207, 4
      %s209 = scalar_lea.vmem %s0, %s208
      %s210 = smul.u32 2, %s15
      %s211 = smul.u32 2, %s15
      %p212 = scmp.lt.s32.totalorder %s211, 3
      %s213 = scalar_select %p212, %s211, 3
      %s214 = smul.addr %s213, 4
      %s215 = scalar_lea.vmem %s1, %s214
      %s216 = smul.u32 2, %s15
      %s217 = smul.u32 2, %s15
      %p218 = scmp.lt.s32.totalorder %s217, 3
      %s219 = scalar_select %p218, %s217, 3
      %s220 = smul.addr %s219, 8
      %s221 = scalar_lea.vmem %s4, %s220
      %s222 = smul.u32 2, %s15
      %v223 = vld [vmem:[%s209] sm:$0xf]
      %v224 = vld [vmem:[%s209 + $0x4] sm:$0xf]
      %v225 = vunpack.c.l.bf16 %v223
      %v226 = vunpack.c.l.bf16 %v224
      %v227 = vld [vmem:[%s2] sm:$0x1]
      %v229 = vlaneseq
      %v230 = vshrl.u32 %v229, 7
      %v231 = vsub.s32 0, %v230
      %v232 = vrot.slane %v227, %v231
      %v234 = vmul.f32 %v225, %v232
      %v235 = vmul.f32 %v226, %v232
      %v236 = vld [vmem:[%s3] sm:$0x1]
      %v238 = vlaneseq
      %v239 = vshrl.u32 %v238, 7
      %v240 = vsub.s32 0, %v239
      %v241 = vrot.slane %v236, %v240
      %v243 = vadd.f32 %v234, %v241
      %v244 = vadd.f32 %v235, %v241
      %v245 = vld [vmem:[%s215] sm:$0xf]
      %v246 = vld [vmem:[%s215 + $0x4] sm:$0xf]
      %v247 = vunpack.c.l.bf16 %v245
      %v248 = vunpack.c.l.bf16 %v246
      %v249 = vadd.f32 %v243, %v247
      %v250 = vadd.f32 %v244, %v248
      %v251 = vmax.f32 %v249, 0.0
      %v252 = vmax.f32 %v250, 0.0
      %253 = vst [vmem:[%s221] sm:$0xff] %v251
      %254 = vst [vmem:[%s221 + $0x8] sm:$0xff] %v252
      %s255 = smul.u32 2, %s15
      %p256 = scmp.lt.s32.totalorder %s255, 3
      %s257 = scalar_select %p256, %s255, 3
      %s258 = smul.addr %s257, 8
      %s259 = scalar_lea.vmem %s4, %s258
      // Predicated region
      $region37: #{residual_block_pallas.5} parent=35 // pred_check
        %p260 = pneg %p127
      $region38: #{residual_block_pallas.5} parent=35 // pred_check_branch
        %262 = sbr.rel (%p260) target = $region40
      $region39: #{residual_block_pallas.5} parent=35 // pred_region
        %s263 = smul.u32 2, %s15
      $region40: #{residual_block_pallas.5} parent=35 // pred_fallthru
        _
    $region36: #{residual_block_pallas.5} parent=5 // pred_fallthru
      _
    %p264 = scmp.le.s32.totalorder 2, %s10
    // Predicated region
    $region41: #{residual_block_pallas.5} parent=5 // pred_check
      %p265 = pneg %p264
    $region42: #{residual_block_pallas.5} parent=5 // pred_check_branch
      %267 = sbr.rel (%p265) target = $region44
    $region43: #{residual_block_pallas.5} parent=5 // pred_region
      %s268 = ssub.s32 %s10, 2
      // Predicated region
      $region45: #{residual_block_pallas.5} parent=43 // pred_check
        %p269 = pneg %p133
      $region46: #{residual_block_pallas.5} parent=43 // pred_check_branch
        %271 = sbr.rel (%p269) target = $region48
      $region47: #{residual_block_pallas.5} parent=43 // pred_region
        %s272 = smul.u32 2, %s16
        %p273 = scmp.lt.s32.totalorder %s272, 3
        %s274 = scalar_select %p273, %s272, 3
        %s275 = smul.addr %s274, 8
        %s276 = scalar_lea.vmem %s4, %s275
      $region48: #{residual_block_pallas.5} parent=43 // pred_fallthru
        _
    $region44: #{residual_block_pallas.5} parent=5 // pred_fallthru
      _
  $region6: #{residual_block_pallas.5} parent=0 // loop_footer
    %s14 = sadd.s32 1, %s10
  $region7: #{residual_block_pallas.5} parent=0 // loop_footer_branch
    %9 = sbr.rel target = $region3
  $region8: #{residual_block_pallas.5} parent=0 // loop_exit
    _

// kernel: residual_block_pallas.3
$region0: #{residual_block_pallas.3}
  #allocation0 [shape = 'u32[]', space=smem, size = 0x4, offset = 0x4, fixed_abs, tag = 'smem constant byte address 0x4 - core index']
  #allocation1 [shape = 'u32[144,128]{1,0:T(1,128)}', space=vmem, size = 0x12000, scoped, tag = 'internal scratch']
  %s0 = inlined_call_operand.vmem [shape: bf16[32,128], index: 0, kind: input, shape index: {}]
  %s1 = inlined_call_operand.vmem [shape: bf16[384,128], index: 1, kind: input, shape index: {}]
  %s2 = inlined_call_operand.vmem [shape: f32[16,128], index: 2, kind: output, shape index: {}]
  %s3 = sld [smem:[#allocation0]]
  $region41: #{residual_block_pallas.3} parent=0
    _
  %s5 = ssub.s32 1, %s3
  %s6 = scalar_select 0, %s5, %s3
  loop: start=0, step=1, limit=4
  $region2: #{residual_block_pallas.3} parent=0 // loop_pre_header
    _
  $region3: #{residual_block_pallas.3} parent=0 // loop_header
    %s8 = sphi 0, %s12
    %p9 = scmp.ge.s32.totalorder %s8, 4
    %s18 = sphi 0, %s20
    %s21 = sphi 0, %s18
    %s22 = sphi 0, %s21
    %s38 = sphi 0, %s22
    %s42 = sphi 0, %s42
    %s44 = sphi 0, %s42
    %s45 = sphi 0, %s44
    %s59 = sphi 0, %s45
    %s65 = sphi 0, %s67
    %s68 = sphi 0, %s65
    %s69 = sphi 0, %s68
    %s85 = sphi 0, %s69
  $region4: #{residual_block_pallas.3} parent=0 // loop_header_branch
    %11 = sbr.rel (%p9) target = $region8
  $region5: #{residual_block_pallas.3} parent=0 // loop_body
    %s13 = ssub.s32 %s8, 1
    %s14 = ssub.s32 %s8, 2
    %s15 = sadd.s32 %s8, 1
    %s16 = ssub.s32 %s8, %s15
    %p17 = scmp.eq.s32.totalorder %s16, 0
    %s19 = sadd.s32 %s18, 1
    %s20 = scalar_select %p17, %s18, %s19
    %p23 = pneg %p17
    %p24 = scmp.eq.s32.totalorder %s8, 1
    %p25 = por %p23, %p24
    %p26 = scmp.ne.s32.totalorder %s18, %s21
    %p27 = scmp.eq.s32.totalorder %s8, 0
    %p28 = por %p26, %p27
    %p29 = scmp.ne.s32.totalorder %s18, %s21
    %p30 = scmp.eq.s32.totalorder %s13, 1
    %p31 = por %p29, %p30
    %p32 = scmp.ne.s32.totalorder %s21, %s22
    %p33 = scmp.eq.s32.totalorder %s13, 0
    %p34 = por %p32, %p33
    %p35 = scmp.ne.s32.totalorder %s21, %s22
    %p36 = scmp.eq.s32.totalorder %s14, 1
    %p37 = por %p35, %p36
    %p39 = scmp.ne.s32.totalorder %s22, %s38
    %p40 = scmp.eq.s32.totalorder %s14, 0
    %p41 = por %p39, %p40
    %s43 = sadd.s32 %s42, 1
    %p46 = scmp.eq.s32.totalorder %s8, 1
    %p47 = scmp.ne.s32.totalorder %s42, %s44
    %p48 = scmp.eq.s32.totalorder %s8, 0
    %p49 = por %p47, %p48
    %p50 = scmp.ne.s32.totalorder %s42, %s44
    %p51 = scmp.eq.s32.totalorder %s13, 1
    %p52 = por %p50, %p51
    %p53 = scmp.ne.s32.totalorder %s44, %s45
    %p54 = scmp.eq.s32.totalorder %s13, 0
    %p55 = por %p53, %p54
    %p56 = scmp.ne.s32.totalorder %s44, %s45
    %p57 = scmp.eq.s32.totalorder %s14, 1
    %p58 = por %p56, %p57
    %p60 = scmp.ne.s32.totalorder %s45, %s59
    %p61 = scmp.eq.s32.totalorder %s14, 0
    %p62 = por %p60, %p61
    %s63 = ssub.s32 %s8, %s15
    %p64 = scmp.eq.s32.totalorder %s63, 0
    %s66 = sadd.s32 %s65, 1
    %s67 = scalar_select %p64, %s65, %s66
    %p70 = pneg %p64
    %p71 = scmp.eq.s32.totalorder %s8, 1
    %p72 = por %p70, %p71
    %p73 = scmp.ne.s32.totalorder %s65, %s68
    %p74 = scmp.eq.s32.totalorder %s8, 0
    %p75 = por %p73, %p74
    %p76 = scmp.ne.s32.totalorder %s65, %s68
    %p77 = scmp.eq.s32.totalorder %s13, 1
    %p78 = por %p76, %p77
    %p79 = scmp.ne.s32.totalorder %s68, %s69
    %p80 = scmp.eq.s32.totalorder %s13, 0
    %p81 = por %p79, %p80
    %p82 = scmp.ne.s32.totalorder %s68, %s69
    %p83 = scmp.eq.s32.totalorder %s14, 1
    %p84 = por %p82, %p83
    %p86 = scmp.ne.s32.totalorder %s69, %s85
    %p87 = scmp.eq.s32.totalorder %s14, 0
    %p88 = por %p86, %p87
    %p89 = scmp.le.s32.totalorder 1, %s8
    %p90 = scmp.lt.s32.totalorder %s8, 3
    %p91 = pnand %p89, %p90
    %p92 = pneg %p91
    // Predicated region
    $region9: #{residual_block_pallas.3} parent=5 // pred_check
      _
    $region10: #{residual_block_pallas.3} parent=5 // pred_check_branch
      %94 = sbr.rel (%p91) target = $region12
    $region11: #{residual_block_pallas.3} parent=5 // pred_region
      %s95 = ssub.s32 %s8, 1
      // Predicated region
      $region13: #{residual_block_pallas.3} parent=11 // pred_check
        %p96 = pneg %p55
      $region14: #{residual_block_pallas.3} parent=11 // pred_check_branch
        %98 = sbr.rel (%p96) target = $region16
      $region15: #{residual_block_pallas.3} parent=11 // pred_region
        _
      $region16: #{residual_block_pallas.3} parent=11 // pred_fallthru
        _
    $region12: #{residual_block_pallas.3} parent=5 // pred_fallthru
      _
    %p99 = scmp.lt.s32.totalorder %s8, 2
    // Predicated region
    $region17: #{residual_block_pallas.3} parent=5 // pred_check
      %p100 = pneg %p99
    $region18: #{residual_block_pallas.3} parent=5 // pred_check_branch
      %102 = sbr.rel (%p100) target = $region20
    $region19: #{residual_block_pallas.3} parent=5 // pred_region
      // Predicated region
      $region21: #{residual_block_pallas.3} parent=19 // pred_check
        %p103 = pneg %p28
      $region22: #{residual_block_pallas.3} parent=19 // pred_check_branch
        %105 = sbr.rel (%p103) target = $region24
      $region23: #{residual_block_pallas.3} parent=19 // pred_region
        %s106 = smul.u32 2, %s8
        %p107 = scmp.lt.s32.totalorder %s106, 3
        %s108 = scalar_select %p107, %s106, 3
        %s109 = smul.addr %s108, 4
        %s110 = scalar_lea.vmem %s0, %s109
        %s111 = smul.u32 2, %s8
      $region24: #{residual_block_pallas.3} parent=19 // pred_fallthru
        _
    $region20: #{residual_block_pallas.3} parent=5 // pred_fallthru
      _
    %p112 = scmp.le.s32.totalorder 1, %s8
    %p113 = scmp.lt.s32.totalorder %s8, 3
    %p114 = pnand %p112, %p113
    %p115 = pneg %p114
    // Predicated region
    $region25: #{residual_block_pallas.3} parent=5 // pred_check
      _
    $region26: #{residual_block_pallas.3} parent=5 // pred_check_branch
      %117 = sbr.rel (%p114) target = $region28
    $region27: #{residual_block_pallas.3} parent=5 // pred_region
      %s118 = ssub.s32 %s8, 1
      %s119 = smul.u32 2, %s13
      %p120 = scmp.lt.s32.totalorder %s119, 3
      %s121 = scalar_select %p120, %s119, 3
      %s122 = smul.addr %s121, 4
      %s123 = scalar_lea.vmem %s0, %s122
      %p124 = pneg %p34
      %p125 = pneg %p31
      %p126 = pneg %p55
      %p127 = pneg %p52
      %p128 = pneg %p81
      %p129 = pneg %p78
      %p130 = scmp.lt.s32.totalorder %s13, 1
      %s131 = scalar_select %p130, %s13, 1
      %s132 = smul.addr %s131, 8
      %s133 = scalar_lea.vmem %s2, %s132
      %s134 = smul.u32 2, %s13
      %p135 = scmp.lt.s32.totalorder %s134, 3
      %s136 = scalar_select %p135, %s134, 3
      %s137 = smul.addr %s136, 4
      %s138 = scalar_lea.vmem %s0, %s137
      %s139 = smul.u32 2, %s13
      %p140 = scmp.lt.s32.totalorder %s13, 1
      %s141 = scalar_select %p140, %s13, 1
      %s142 = smul.addr %s141, 8
      %s143 = scalar_lea.vmem %s2, %s142
      %v145 = vld [vmem:[%s138] sm:$0xf]
      %v146 = vld [vmem:[%s138 + $0x4] sm:$0xf]
      %v147 = vunpack.c.l.bf16 %v145
      %v148 = vunpack.c.l.bf16 %v146
      %v149 = vlaneseq
      %v150 = vshrl.u32 %v149, 7
      %v151 = vadd.s32 %v150, 8
      %vm152 = vcmp.lt.s32.totalorder %v150, 0
      %v153 = vsub.s32 0, %v150
      %v154 = vsel %vm152, %v153, %v150
      %v155 = vshrl.u32 %v154, 4
      %v156 = vand.u32 %v154, 15
      %v157 = vsub.s32 0, %v156
      %v158 = vsel %vm152, %v157, %v156
      %vm159 = vcmp.lt.s32.totalorder %v151, 0
      %v160 = vsub.s32 0, %v151
      %v161 = vsel %vm159, %v160, %v151
      %v162 = vshrl.u32 %v161, 4
      %v163 = vand.u32 %v161, 15
      %v164 = vsub.s32 0, %v163
      %v165 = vsel %vm159, %v164, %v163
      %vm166 = vcmp.ne.s32.totalorder %v158, 0
      %vm167 = vcmp.ne.s32.totalorder %v165, 0
      %vm168 = vcmp.lt.s32.totalorder %v158, 0
      %vm169 = vcmp.lt.s32.totalorder %v165, 0
      %vm170 = vmand %vm168, %vm166
      %vm171 = vmand %vm169, %vm167
      %v172 = vadd.s32 %v158, 16
      %v173 = vadd.s32 %v165, 16
      %v174 = vsel %vm170, %v172, %v158
      %v175 = vsel %vm171, %v173, %v165
      %vm176 = vcmp.ne.s32.totalorder %v174, 0
      %vm177 = vcmp.ne.s32.totalorder %v175, 0
      %vm178 = vcmp.ne.s32.totalorder %v174, 15
      %vm179 = vcmp.ne.s32.totalorder %v175, 15
      %vm180 = vcmp.lt.s32.totalorder %v174, 16
      %vm181 = vcmp.lt.s32.totalorder %v175, 16
      %v182 = vrot.slane %v147, 7
      %v183 = vrot.slane %v148, 7
      %vm184 = vcmp.lt.s32.totalorder %v150, 1
      %v185 = vsel %vm184, %v182, %v183
      %v186 = vsel %vm184, %v183, %v182
      %v187 = vsel %vm176, 1, 0
      %v188 = vsel %vm177, 1, 0
      %vm189 = vcmp.eq.s32.totalorder %v187, 1
      %vm190 = vcmp.eq.s32.totalorder %v188, 1
      %v191 = vsel %vm189, %v186, 0.0
      %v192 = vsel %vm190, %v185, 0.0
      %v193 = vpack.c.bf16 %v192, %v191
      %v194 = vrot.slane %v147, 1
      %v195 = vrot.slane %v148, 1
      %vm196 = vcmp.lt.s32.totalorder %v150, 7
      %v197 = vsel %vm196, %v194, %v195
      %v198 = vsel %vm196, %v195, %v194
      %v199 = vsel %vm178, 1, 0
      %v200 = vsel %vm179, 1, 0
      %vm201 = vcmp.eq.s32.totalorder %v199, 1
      %vm202 = vcmp.eq.s32.totalorder %v200, 1
      %v203 = vsel %vm201, %v197, 0.0
      %v204 = vsel %vm202, %v198, 0.0
      %v205 = vpack.c.bf16 %v204, %v203
      %v206 = vld [vmem:[%s1 + $0x40] sm:$0xf]
      %v207 = vld [vmem:[%s1 + $0x44] sm:$0xf]
      %v208 = vld [vmem:[%s1 + $0x48] sm:$0xf]
      %v209 = vld [vmem:[%s1 + $0x4c] sm:$0xf]
      %v210 = vld [vmem:[%s1 + $0x50] sm:$0xf]
      %v211 = vld [vmem:[%s1 + $0x54] sm:$0xf]
      %v212 = vld [vmem:[%s1 + $0x58] sm:$0xf]
      %v213 = vld [vmem:[%s1 + $0x5c] sm:$0xf]
      %v214 = vld [vmem:[%s1 + $0x60] sm:$0xf]
      %v215 = vld [vmem:[%s1 + $0x64] sm:$0xf]
      %v216 = vld [vmem:[%s1 + $0x68] sm:$0xf]
      %v217 = vld [vmem:[%s1 + $0x6c] sm:$0xf]
      %v218 = vld [vmem:[%s1 + $0x70] sm:$0xf]
      %v219 = vld [vmem:[%s1 + $0x74] sm:$0xf]
      %v220 = vld [vmem:[%s1 + $0x78] sm:$0xf]
      %v221 = vld [vmem:[%s1 + $0x7c] sm:$0xf]
      %v222 = vld [vmem:[%s1] sm:$0xf]
      %v223 = vld [vmem:[%s1 + $0x4] sm:$0xf]
      %v224 = vld [vmem:[%s1 + $0x8] sm:$0xf]
      %v225 = vld [vmem:[%s1 + $0xc] sm:$0xf]
      %v226 = vld [vmem:[%s1 + $0x10] sm:$0xf]
      %v227 = vld [vmem:[%s1 + $0x14] sm:$0xf]
      %v228 = vld [vmem:[%s1 + $0x18] sm:$0xf]
      %v229 = vld [vmem:[%s1 + $0x1c] sm:$0xf]
      %v230 = vld [vmem:[%s1 + $0x20] sm:$0xf]
      %v231 = vld [vmem:[%s1 + $0x24] sm:$0xf]
      %v232 = vld [vmem:[%s1 + $0x28] sm:$0xf]
      %v233 = vld [vmem:[%s1 + $0x2c] sm:$0xf]
      %v234 = vld [vmem:[%s1 + $0x30] sm:$0xf]
      %v235 = vld [vmem:[%s1 + $0x34] sm:$0xf]
      %v236 = vld [vmem:[%s1 + $0x38] sm:$0xf]
      %v237 = vld [vmem:[%s1 + $0x3c] sm:$0xf]
      %v254 = vunpack.c.l.b16 %v222
      %v255 = vunpack.c.l.b16 %v223
      %v256 = vunpack.c.l.b16 %v224
      %v257 = vunpack.c.l.b16 %v225
      %v258 = vunpack.c.l.b16 %v226
      %v259 = vunpack.c.l.b16 %v227
      %v260 = vunpack.c.l.b16 %v228
      %v261 = vunpack.c.l.b16 %v229
      %v262 = vunpack.c.l.b16 %v230
      %v263 = vunpack.c.l.b16 %v231
      %v264 = vunpack.c.l.b16 %v232
      %v265 = vunpack.c.l.b16 %v233
      %v266 = vunpack.c.l.b16 %v234
      %v267 = vunpack.c.l.b16 %v235
      %v268 = vunpack.c.l.b16 %v236
      %v269 = vunpack.c.l.b16 %v237
      %v270 = vpack.c.b16 %v255, %v254
      %v271 = vpack.c.b16 %v257, %v256
      %v272 = vpack.c.b16 %v259, %v258
      %v273 = vpack.c.b16 %v261, %v260
      %v274 = vpack.c.b16 %v263, %v262
      %v275 = vpack.c.b16 %v265, %v264
      %v276 = vpack.c.b16 %v267, %v266
      %v277 = vpack.c.b16 %v269, %v268
      %286 = vmatprep.subr.bf16.mxu0 0
      %287 = vmatpush1.bf16.msra.mxu0 %v277
      %288 = vmatprep.subr.bf16.mxu0 0
      %289 = vmatpush1.bf16.msra.mxu0 %v276
      %290 = vmatprep.subr.bf16.mxu0 0
      %291 = vmatpush1.bf16.msra.mxu0 %v275
      %292 = vmatprep.subr.bf16.mxu0 0
      %293 = vmatpush1.bf16.msra.mxu0 %v274
      %294 = vmatprep.subr.bf16.mxu0 0
      %295 = vmatpush1.bf16.msra.mxu0 %v273
      %296 = vmatprep.subr.bf16.mxu0 0
      %297 = vmatpush1.bf16.msra.mxu0 %v272
      %298 = vmatprep.subr.bf16.mxu0 0
      %299 = vmatpush1.bf16.msra.mxu0 %v271
      %300 = vmatprep.subr.bf16.mxu0 0
      %301 = vmatpush1.bf16.msra.mxu0 %v270
      %302 = vmatprep.subr.bf16.mxu0 0
      %303 = vmatpush2.bf16.msra.mxu0 0
      %304 = vmatprep.subr.bf16.mxu0 0
      %305 = vmatpush2.bf16.msra.mxu0 0
      %306 = vmatprep.subr.bf16.mxu0 0
      %307 = vmatpush2.bf16.msra.mxu0 0
      %308 = vmatprep.subr.bf16.mxu0 0
      %309 = vmatpush2.bf16.msra.mxu0 0
      %310 = vmatprep.subr.bf16.mxu0 0
      %311 = vmatpush2.bf16.msra.mxu0 0
      %312 = vmatprep.subr.bf16.mxu0 0
      %313 = vmatpush2.bf16.msra.mxu0 0
      %314 = vmatprep.subr.bf16.mxu0 0
      %315 = vmatpush2.bf16.msra.mxu0 0
      %316 = vmatprep.subr.bf16.mxu0 0
      %317 = vmatpush2.bf16.msra.mxu0 0
      %318 = vmatprep.mubr.bf16.mxu0 0
      %319 = vmatmul.mubr.bf16.gmra.mxu0 %v193
      %v320 = vpop.f32.mrf.mxu0
      %v321 = vadd.f32 0.0, %v320
      %v322 = vpop.f32.mrf.mxu0
      %v323 = vpop.f32.mrf.mxu0
      %v324 = vadd.f32 0.0, %v323
      %v325 = vpop.f32.mrf.mxu0
      %326 = vdwg.mxu0
      %v329 = vunpack.c.l.b16 %v145
      %v330 = vunpack.c.l.b16 %v146
      %v331 = vpack.c.b16 %v330, %v329
      %v349 = vunpack.c.l.b16 %v206
      %v350 = vunpack.c.l.b16 %v207
      %v351 = vunpack.c.l.b16 %v208
      %v352 = vunpack.c.l.b16 %v209
      %v353 = vunpack.c.l.b16 %v210
      %v354 = vunpack.c.l.b16 %v211
      %v355 = vunpack.c.l.b16 %v212
      %v356 = vunpack.c.l.b16 %v213
      %v357 = vunpack.c.l.b16 %v214
      %v358 = vunpack.c.l.b16 %v215
      %v359 = vunpack.c.l.b16 %v216
      %v360 = vunpack.c.l.b16 %v217
      %v361 = vunpack.c.l.b16 %v218
      %v362 = vunpack.c.l.b16 %v219
      %v363 = vunpack.c.l.b16 %v220
      %v364 = vunpack.c.l.b16 %v221
      %v365 = vpack.c.b16 %v350, %v349
      %v366 = vpack.c.b16 %v352, %v351
      %v367 = vpack.c.b16 %v354, %v353
      %v368 = vpack.c.b16 %v356, %v355
      %v369 = vpack.c.b16 %v358, %v357
      %v370 = vpack.c.b16 %v360, %v359
      %v371 = vpack.c.b16 %v362, %v361
      %v372 = vpack.c.b16 %v364, %v363
      %381 = vmatprep.subr.bf16.mxu0 0
      %382 = vmatpush1.bf16.msra.mxu0 %v372
      %383 = vmatprep.subr.bf16.mxu0 0
      %384 = vmatpush1.bf16.msra.mxu0 %v371
      %385 = vmatprep.subr.bf16.mxu0 0
      %386 = vmatpush1.bf16.msra.mxu0 %v370
      %387 = vmatprep.subr.bf16.mxu0 0
      %388 = vmatpush1.bf16.msra.mxu0 %v369
      %389 = vmatprep.subr.bf16.mxu0 0
      %390 = vmatpush1.bf16.msra.mxu0 %v368
      %391 = vmatprep.subr.bf16.mxu0 0
      %392 = vmatpush1.bf16.msra.mxu0 %v367
      %393 = vmatprep.subr.bf16.mxu0 0
      %394 = vmatpush1.bf16.msra.mxu0 %v366
      %395 = vmatprep.subr.bf16.mxu0 0
      %396 = vmatpush1.bf16.msra.mxu0 %v365
      %397 = vmatprep.subr.bf16.mxu0 0
      %398 = vmatpush2.bf16.msra.mxu0 0
      %399 = vmatprep.subr.bf16.mxu0 0
      %400 = vmatpush2.bf16.msra.mxu0 0
      %401 = vmatprep.subr.bf16.mxu0 0
      %402 = vmatpush2.bf16.msra.mxu0 0
      %403 = vmatprep.subr.bf16.mxu0 0
      %404 = vmatpush2.bf16.msra.mxu0 0
      %405 = vmatprep.subr.bf16.mxu0 0
      %406 = vmatpush2.bf16.msra.mxu0 0
      %407 = vmatprep.subr.bf16.mxu0 0
      %408 = vmatpush2.bf16.msra.mxu0 0
      %409 = vmatprep.subr.bf16.mxu0 0
      %410 = vmatpush2.bf16.msra.mxu0 0
      %411 = vmatprep.subr.bf16.mxu0 0
      %412 = vmatpush2.bf16.msra.mxu0 0
      %413 = vmatprep.mubr.bf16.mxu0 0
      %414 = vmatmul.mubr.bf16.gmra.mxu0 %v331
      %v415 = vpop.f32.mrf.mxu0
      %v416 = vadd.f32 %v321, %v415
      %v417 = vpop.f32.mrf.mxu0
      %v418 = vpop.f32.mrf.mxu0
      %v419 = vadd.f32 %v324, %v418
      %v420 = vpop.f32.mrf.mxu0
      %421 = vdwg.mxu0
      %v422 = vld [vmem:[%s1 + $0x80] sm:$0xf]
      %v423 = vld [vmem:[%s1 + $0x84] sm:$0xf]
      %v424 = vld [vmem:[%s1 + $0x88] sm:$0xf]
      %v425 = vld [vmem:[%s1 + $0x8c] sm:$0xf]
      %v426 = vld [vmem:[%s1 + $0x90] sm:$0xf]
      %v427 = vld [vmem:[%s1 + $0x94] sm:$0xf]
      %v428 = vld [vmem:[%s1 + $0x98] sm:$0xf]
      %v429 = vld [vmem:[%s1 + $0x9c] sm:$0xf]
      %v430 = vld [vmem:[%s1 + $0xa0] sm:$0xf]
      %v431 = vld [vmem:[%s1 + $0xa4] sm:$0xf]
      %v432 = vld [vmem:[%s1 + $0xa8] sm:$0xf]
      %v433 = vld [vmem:[%s1 + $0xac] sm:$0xf]
      %v434 = vld [vmem:[%s1 + $0xb0] sm:$0xf]
      %v435 = vld [vmem:[%s1 + $0xb4] sm:$0xf]
      %v436 = vld [vmem:[%s1 + $0xb8] sm:$0xf]
      %v437 = vld [vmem:[%s1 + $0xbc] sm:$0xf]
      %v454 = vunpack.c.l.b16 %v422
      %v455 = vunpack.c.l.b16 %v423
      %v456 = vunpack.c.l.b16 %v424
      %v457 = vunpack.c.l.b16 %v425
      %v458 = vunpack.c.l.b16 %v426
      %v459 = vunpack.c.l.b16 %v427
      %v460 = vunpack.c.l.b16 %v428
      %v461 = vunpack.c.l.b16 %v429
      %v462 = vunpack.c.l.b16 %v430
      %v463 = vunpack.c.l.b16 %v431
      %v464 = vunpack.c.l.b16 %v432
      %v465 = vunpack.c.l.b16 %v433
      %v466 = vunpack.c.l.b16 %v434
      %v467 = vunpack.c.l.b16 %v435
      %v468 = vunpack.c.l.b16 %v436
      %v469 = vunpack.c.l.b16 %v437
      %v470 = vpack.c.b16 %v455, %v454
      %v471 = vpack.c.b16 %v457, %v456
      %v472 = vpack.c.b16 %v459, %v458
      %v473 = vpack.c.b16 %v461, %v460
      %v474 = vpack.c.b16 %v463, %v462
      %v475 = vpack.c.b16 %v465, %v464
      %v476 = vpack.c.b16 %v467, %v466
      %v477 = vpack.c.b16 %v469, %v468
      %486 = vmatprep.subr.bf16.mxu0 0
      %487 = vmatpush1.bf16.msra.mxu0 %v477
      %488 = vmatprep.subr.bf16.mxu0 0
      %489 = vmatpush1.bf16.msra.mxu0 %v476
      %490 = vmatprep.subr.bf16.mxu0 0
      %491 = vmatpush1.bf16.msra.mxu0 %v475
      %492 = vmatprep.subr.bf16.mxu0 0
      %493 = vmatpush1.bf16.msra.mxu0 %v474
      %494 = vmatprep.subr.bf16.mxu0 0
      %495 = vmatpush1.bf16.msra.mxu0 %v473
      %496 = vmatprep.subr.bf16.mxu0 0
      %497 = vmatpush1.bf16.msra.mxu0 %v472
      %498 = vmatprep.subr.bf16.mxu0 0
      %499 = vmatpush1.bf16.msra.mxu0 %v471
      %500 = vmatprep.subr.bf16.mxu0 0
      %501 = vmatpush1.bf16.msra.mxu0 %v470
      %502 = vmatprep.subr.bf16.mxu0 0
      %503 = vmatpush2.bf16.msra.mxu0 0
      %504 = vmatprep.subr.bf16.mxu0 0
      %505 = vmatpush2.bf16.msra.mxu0 0
      %506 = vmatprep.subr.bf16.mxu0 0
      %507 = vmatpush2.bf16.msra.mxu0 0
      %508 = vmatprep.subr.bf16.mxu0 0
      %509 = vmatpush2.bf16.msra.mxu0 0
      %510 = vmatprep.subr.bf16.mxu0 0
      %511 = vmatpush2.bf16.msra.mxu0 0
      %512 = vmatprep.subr.bf16.mxu0 0
      %513 = vmatpush2.bf16.msra.mxu0 0
      %514 = vmatprep.subr.bf16.mxu0 0
      %515 = vmatpush2.bf16.msra.mxu0 0
      %516 = vmatprep.subr.bf16.mxu0 0
      %517 = vmatpush2.bf16.msra.mxu0 0
      %518 = vmatprep.mubr.bf16.mxu0 0
      %519 = vmatmul.mubr.bf16.gmra.mxu0 %v205
      %v520 = vpop.f32.mrf.mxu0
      %v521 = vadd.f32 0.0, %v520
      %v522 = vpop.f32.mrf.mxu0
      %v523 = vpop.f32.mrf.mxu0
      %v524 = vadd.f32 0.0, %v523
      %v525 = vpop.f32.mrf.mxu0
      %526 = vdwg.mxu0
      %v527 = vadd.f32 %v416, %v521
      %v528 = vadd.f32 %v419, %v524
      %v529 = vsel %vm180, 1, 0
      %v530 = vsel %vm181, 1, 0
      %vm531 = vcmp.eq.s32.totalorder %v529, 1
      %vm532 = vcmp.eq.s32.totalorder %v530, 1
      %v533 = vsel %vm531, %v527, 0.0
      %v534 = vsel %vm532, %v528, 0.0
      %v535 = vadd.f32 %v533, %v534
      %v536 = vrot.slane %v535, 4
      %v537 = vadd.f32 %v535, %v536
      %v538 = vrot.slane %v537, 2
      %v539 = vadd.f32 %v537, %v538
      %v540 = vrot.slane %v539, 1
      %v541 = vadd.f32 %v539, %v540
      %v542 = vmul.f32 %v533, %v533
      %v543 = vmul.f32 %v534, %v534
      %v544 = vadd.f32 %v542, %v543
      %v545 = vrot.slane %v544, 4
      %v546 = vadd.f32 %v544, %v545
      %v547 = vrot.slane %v546, 2
      %v548 = vadd.f32 %v546, %v547
      %v549 = vrot.slane %v548, 1
      %v550 = vadd.f32 %v548, %v549
      %vm551 = vcmask 1040384
      %v552 = vsel %vm551, %v541, %v550
      %vm553 = vcmask 1041408
      %v554 = vsel %vm553, %v552, 0.0
      %555 = vst [vmem:[%s143] sm:$0xff] %v554
      %p556 = scmp.lt.s32.totalorder %s13, 1
      %s557 = scalar_select %p556, %s13, 1
      %s558 = smul.addr %s557, 8
      %s559 = scalar_lea.vmem %s2, %s558
      // Predicated region
      $region29: #{residual_block_pallas.3} parent=27 // pred_check
        %p560 = pneg %p78
      $region30: #{residual_block_pallas.3} parent=27 // pred_check_branch
        %562 = sbr.rel (%p560) target = $region32
      $region31: #{residual_block_pallas.3} parent=27 // pred_region
        _
      $region32: #{residual_block_pallas.3} parent=27 // pred_fallthru
        _
    $region28: #{residual_block_pallas.3} parent=5 // pred_fallthru
      _
    %p563 = scmp.le.s32.totalorder 2, %s8
    // Predicated region
    $region33: #{residual_block_pallas.3} parent=5 // pred_check
      %p564 = pneg %p563
    $region34: #{residual_block_pallas.3} parent=5 // pred_check_branch
      %566 = sbr.rel (%p564) target = $region36
    $region35: #{residual_block_pallas.3} parent=5 // pred_region
      %s567 = ssub.s32 %s8, 2
      // Predicated region
      $region37: #{residual_block_pallas.3} parent=35 // pred_check
        %p568 = pneg %p84
      $region38: #{residual_block_pallas.3} parent=35 // pred_check_branch
        %570 = sbr.rel (%p568) target = $region40
      $region39: #{residual_block_pallas.3} parent=35 // pred_region
        %p571 = scmp.lt.s32.totalorder %s14, 1
        %s572 = scalar_select %p571, %s14, 1
        %s573 = smul.addr %s572, 8
        %s574 = scalar_lea.vmem %s2, %s573
      $region40: #{residual_block_pallas.3} parent=35 // pred_fallthru
        _
    $region36: #{residual_block_pallas.3} parent=5 // pred_fallthru
      _
  $region6: #{residual_block_pallas.3} parent=0 // loop_footer
    %s12 = sadd.s32 1, %s8
  $region7: #{residual_block_pallas.3} parent=0 // loop_footer_branch
    %7 = sbr.rel target = $region3
  $region8: #{residual_block_pallas.3} parent=0 // loop_exit
    _

// kernel: residual_block_pallas.4
$region0: #{residual_block_pallas.4}
  #allocation0 [shape = 'u32[]', space=smem, size = 0x4, offset = 0x4, fixed_abs, tag = 'smem constant byte address 0x4 - core index']
  #allocation1 [shape = 'u32[144,128]{1,0:T(1,128)}', space=vmem, size = 0x12000, scoped, tag = 'internal scratch']
  %s0 = inlined_call_operand.vmem [shape: bf16[32,128], index: 0, kind: input, shape index: {}]
  %s1 = inlined_call_operand.vmem [shape: f32[1,128], index: 1, kind: input, shape index: {}]
  %s2 = inlined_call_operand.vmem [shape: f32[1,128], index: 2, kind: input, shape index: {}]
  %s3 = inlined_call_operand.vmem [shape: bf16[384,128], index: 3, kind: input, shape index: {}]
  %s4 = inlined_call_operand.vmem [shape: bf16[384,128], index: 4, kind: input, shape index: {}]
  %s5 = inlined_call_operand.vmem [shape: bf16[32,128], index: 5, kind: output, shape index: {0}]
  %s6 = inlined_call_operand.vmem [shape: f32[16,128], index: 6, kind: output, shape index: {1}]
  %7 = xla_tuple %s5, %s6
  %s8 = sld [smem:[#allocation0]]
  $region61: #{residual_block_pallas.4} parent=0
    _
  %s10 = ssub.s32 1, %s8
  %s11 = scalar_select 0, %s10, %s8
  loop: start=0, step=1, limit=4
  $region2: #{residual_block_pallas.4} parent=0 // loop_pre_header
    _
  $region3: #{residual_block_pallas.4} parent=0 // loop_header
    %s13 = sphi 0, %s17
    %p14 = scmp.ge.s32.totalorder %s13, 4
    %s23 = sphi 0, %s25
    %s26 = sphi 0, %s23
    %s27 = sphi 0, %s26
    %s43 = sphi 0, %s27
    %s47 = sphi 0, %s47
    %s49 = sphi 0, %s47
    %s50 = sphi 0, %s49
    %s64 = sphi 0, %s50
    %s68 = sphi 0, %s68
    %s70 = sphi 0, %s68
    %s71 = sphi 0, %s70
    %s85 = sphi 0, %s71
    %s89 = sphi 0, %s89
    %s91 = sphi 0, %s89
    %s92 = sphi 0, %s91
    %s106 = sphi 0, %s92
    %s110 = sphi 0, %s110
    %s112 = sphi 0, %s110
    %s113 = sphi 0, %s112
    %s127 = sphi 0, %s113
    %s133 = sphi 0, %s135
    %s136 = sphi 0, %s133
    %s137 = sphi 0, %s136
    %s153 = sphi 0, %s137
    %s159 = sphi 0, %s161
    %s162 = sphi 0, %s159
    %s163 = sphi 0, %s162
    %s179 = sphi 0, %s163
  $region4: #{residual_block_pallas.4} parent=0 // loop_header_branch
    %16 = sbr.rel (%p14) target = $region8
  $region5: #{residual_block_pallas.4} parent=0 // loop_body
    %s18 = ssub.s32 %s13, 1
    %s19 = ssub.s32 %s13, 2
    %s20 = sadd.s32 %s13, 1
    %s21 = ssub.s32 %s13, %s20
    %p22 = scmp.eq.s32.totalorder %s21, 0
    %s24 = sadd.s32 %s23, 1
    %s25 = scalar_select %p22, %s23, %s24
    %p28 = pneg %p22
    %p29 = scmp.eq.s32.totalorder %s13, 1
    %p30 = por %p28, %p29
    %p31 = scmp.ne.s32.totalorder %s23, %s26
    %p32 = scmp.eq.s32.totalorder %s13, 0
    %p33 = por %p31, %p32
    %p34 = scmp.ne.s32.totalorder %s23, %s26
    %p35 = scmp.eq.s32.totalorder %s18, 1
    %p36 = por %p34, %p35
    %p37 = scmp.ne.s32.totalorder %s26, %s27
    %p38 = scmp.eq.s32.totalorder %s18, 0
    %p39 = por %p37, %p38
    %p40 = scmp.ne.s32.totalorder %s26, %s27
    %p41 = scmp.eq.s32.totalorder %s19, 1
    %p42 = por %p40, %p41
    %p44 = scmp.ne.s32.totalorder %s27, %s43
    %p45 = scmp.eq.s32.totalorder %s19, 0
    %p46 = por %p44, %p45
    %s48 = sadd.s32 %s47, 1
    %p51 = scmp.eq.s32.totalorder %s13, 1
    %p52 = scmp.ne.s32.totalorder %s47, %s49
    %p53 = scmp.eq.s32.totalorder %s13, 0
    %p54 = por %p52, %p53
    %p55 = scmp.ne.s32.totalorder %s47, %s49
    %p56 = scmp.eq.s32.totalorder %s18, 1
    %p57 = por %p55, %p56
    %p58 = scmp.ne.s32.totalorder %s49, %s50
    %p59 = scmp.eq.s32.totalorder %s18, 0
    %p60 = por %p58, %p59
    %p61 = scmp.ne.s32.totalorder %s49, %s50
    %p62 = scmp.eq.s32.totalorder %s19, 1
    %p63 = por %p61, %p62
    %p65 = scmp.ne.s32.totalorder %s50, %s64
    %p66 = scmp.eq.s32.totalorder %s19, 0
    %p67 = por %p65, %p66
    %s69 = sadd.s32 %s68, 1
    %p72 = scmp.eq.s32.totalorder %s13, 1
    %p73 = scmp.ne.s32.totalorder %s68, %s70
    %p74 = scmp.eq.s32.totalorder %s13, 0
    %p75 = por %p73, %p74
    %p76 = scmp.ne.s32.totalorder %s68, %s70
    %p77 = scmp.eq.s32.totalorder %s18, 1
    %p78 = por %p76, %p77
    %p79 = scmp.ne.s32.totalorder %s70, %s71
    %p80 = scmp.eq.s32.totalorder %s18, 0
    %p81 = por %p79, %p80
    %p82 = scmp.ne.s32.totalorder %s70, %s71
    %p83 = scmp.eq.s32.totalorder %s19, 1
    %p84 = por %p82, %p83
    %p86 = scmp.ne.s32.totalorder %s71, %s85
    %p87 = scmp.eq.s32.totalorder %s19, 0
    %p88 = por %p86, %p87
    %s90 = sadd.s32 %s89, 1
    %p93 = scmp.eq.s32.totalorder %s13, 1
    %p94 = scmp.ne.s32.totalorder %s89, %s91
    %p95 = scmp.eq.s32.totalorder %s13, 0
    %p96 = por %p94, %p95
    %p97 = scmp.ne.s32.totalorder %s89, %s91
    %p98 = scmp.eq.s32.totalorder %s18, 1
    %p99 = por %p97, %p98
    %p100 = scmp.ne.s32.totalorder %s91, %s92
    %p101 = scmp.eq.s32.totalorder %s18, 0
    %p102 = por %p100, %p101
    %p103 = scmp.ne.s32.totalorder %s91, %s92
    %p104 = scmp.eq.s32.totalorder %s19, 1
    %p105 = por %p103, %p104
    %p107 = scmp.ne.s32.totalorder %s92, %s106
    %p108 = scmp.eq.s32.totalorder %s19, 0
    %p109 = por %p107, %p108
    %s111 = sadd.s32 %s110, 1
    %p114 = scmp.eq.s32.totalorder %s13, 1
    %p115 = scmp.ne.s32.totalorder %s110, %s112
    %p116 = scmp.eq.s32.totalorder %s13, 0
    %p117 = por %p115, %p116
    %p118 = scmp.ne.s32.totalorder %s110, %s112
    %p119 = scmp.eq.s32.totalorder %s18, 1
    %p120 = por %p118, %p119
    %p121 = scmp.ne.s32.totalorder %s112, %s113
    %p122 = scmp.eq.s32.totalorder %s18, 0
    %p123 = por %p121, %p122
    %p124 = scmp.ne.s32.totalorder %s112, %s113
    %p125 = scmp.eq.s32.totalorder %s19, 1
    %p126 = por %p124, %p125
    %p128 = scmp.ne.s32.totalorder %s113, %s127
    %p129 = scmp.eq.s32.totalorder %s19, 0
    %p130 = por %p128, %p129
    %s131 = ssub.s32 %s13, %s20
    %p132 = scmp.eq.s32.totalorder %s131, 0
    %s134 = sadd.s32 %s133, 1
    %s135 = scalar_select %p132, %s133, %s134
    %p138 = pneg %p132
    %p139 = scmp.eq.s32.totalorder %s13, 1
    %p140 = por %p138, %p139
    %p141 = scmp.ne.s32.totalorder %s133, %s136
    %p142 = scmp.eq.s32.totalorder %s13, 0
    %p143 = por %p141, %p142
    %p144 = scmp.ne.s32.totalorder %s133, %s136
    %p145 = scmp.eq.s32.totalorder %s18, 1
    %p146 = por %p144, %p145
    %p147 = scmp.ne.s32.totalorder %s136, %s137
    %p148 = scmp.eq.s32.totalorder %s18, 0
    %p149 = por %p147, %p148
    %p150 = scmp.ne.s32.totalorder %s136, %s137
    %p151 = scmp.eq.s32.totalorder %s19, 1
    %p152 = por %p150, %p151
    %p154 = scmp.ne.s32.totalorder %s137, %s153
    %p155 = scmp.eq.s32.totalorder %s19, 0
    %p156 = por %p154, %p155
    %s157 = ssub.s32 %s13, %s20
    %p158 = scmp.eq.s32.totalorder %s157, 0
    %s160 = sadd.s32 %s159, 1
    %s161 = scalar_select %p158, %s159, %s160
    %p164 = pneg %p158
    %p165 = scmp.eq.s32.totalorder %s13, 1
    %p166 = por %p164, %p165
    %p167 = scmp.ne.s32.totalorder %s159, %s162
    %p168 = scmp.eq.s32.totalorder %s13, 0
    %p169 = por %p167, %p168
    %p170 = scmp.ne.s32.totalorder %s159, %s162
    %p171 = scmp.eq.s32.totalorder %s18, 1
    %p172 = por %p170, %p171
    %p173 = scmp.ne.s32.totalorder %s162, %s163
    %p174 = scmp.eq.s32.totalorder %s18, 0
    %p175 = por %p173, %p174
    %p176 = scmp.ne.s32.totalorder %s162, %s163
    %p177 = scmp.eq.s32.totalorder %s19, 1
    %p178 = por %p176, %p177
    %p180 = scmp.ne.s32.totalorder %s163, %s179
    %p181 = scmp.eq.s32.totalorder %s19, 0
    %p182 = por %p180, %p181
    %p183 = scmp.le.s32.totalorder 1, %s13
    %p184 = scmp.lt.s32.totalorder %s13, 3
    %p185 = pnand %p183, %p184
    %p186 = pneg %p185
    // Predicated region
    $region9: #{residual_block_pallas.4} parent=5 // pred_check
      _
    $region10: #{residual_block_pallas.4} parent=5 // pred_check_branch
      %188 = sbr.rel (%p185) target = $region12
    $region11: #{residual_block_pallas.4} parent=5 // pred_region
      %s189 = ssub.s32 %s13, 1
      // Predicated region
      $region13: #{residual_block_pallas.4} parent=11 // pred_check
        %p190 = pneg %p60
      $region14: #{residual_block_pallas.4} parent=11 // pred_check_branch
        %192 = sbr.rel (%p190) target = $region16
      $region15: #{residual_block_pallas.4} parent=11 // pred_region
        _
      $region16: #{residual_block_pallas.4} parent=11 // pred_fallthru
        _
      // Predicated region
      $region17: #{residual_block_pallas.4} parent=11 // pred_check
        %p193 = pneg %p81
      $region18: #{residual_block_pallas.4} parent=11 // pred_check_branch
        %195 = sbr.rel (%p193) target = $region20
      $region19: #{residual_block_pallas.4} parent=11 // pred_region
        _
      $region20: #{residual_block_pallas.4} parent=11 // pred_fallthru
        _
      // Predicated region
      $region21: #{residual_block_pallas.4} parent=11 // pred_check
        %p196 = pneg %p102
      $region22: #{residual_block_pallas.4} parent=11 // pred_check_branch
        %198 = sbr.rel (%p196) target = $region24
      $region23: #{residual_block_pallas.4} parent=11 // pred_region
        _
      $region24: #{residual_block_pallas.4} parent=11 // pred_fallthru
        _
      // Predicated region
      $region25: #{residual_block_pallas.4} parent=11 // pred_check
        %p199 = pneg %p123
      $region26: #{residual_block_pallas.4} parent=11 // pred_check_branch
        %201 = sbr.rel (%p199) target = $region28
      $region27: #{residual_block_pallas.4} parent=11 // pred_region
        _
      $region28: #{residual_block_pallas.4} parent=11 // pred_fallthru
        _
    $region12: #{residual_block_pallas.4} parent=5 // pred_fallthru
      _
    %p202 = scmp.lt.s32.totalorder %s13, 2
    // Predicated region
    $region29: #{residual_block_pallas.4} parent=5 // pred_check
      %p203 = pneg %p202
    $region30: #{residual_block_pallas.4} parent=5 // pred_check_branch
      %205 = sbr.rel (%p203) target = $region32
    $region31: #{residual_block_pallas.4} parent=5 // pred_region
      // Predicated region
      $region33: #{residual_block_pallas.4} parent=31 // pred_check
        %p206 = pneg %p33
      $region34: #{residual_block_pallas.4} parent=31 // pred_check_branch
        %208 = sbr.rel (%p206) target = $region36
      $region35: #{residual_block_pallas.4} parent=31 // pred_region
        %s209 = smul.u32 2, %s13
        %p210 = scmp.lt.s32.totalorder %s209, 3
        %s211 = scalar_select %p210, %s209, 3
        %s212 = smul.addr %s211, 4
        %s213 = scalar_lea.vmem %s0, %s212
        %s214 = smul.u32 2, %s13
      $region36: #{residual_block_pallas.4} parent=31 // pred_fallthru
        _
    $region32: #{residual_block_pallas.4} parent=5 // pred_fallthru
      _
    %p215 = scmp.le.s32.totalorder 1, %s13
    %p216 = scmp.lt.s32.totalorder %s13, 3
    %p217 = pnand %p215, %p216
    %p218 = pneg %p217
    // Predicated region
    $region37: #{residual_block_pallas.4} parent=5 // pred_check
      _
    $region38: #{residual_block_pallas.4} parent=5 // pred_check_branch
      %220 = sbr.rel (%p217) target = $region40
    $region39: #{residual_block_pallas.4} parent=5 // pred_region
      %s221 = ssub.s32 %s13, 1
      %s222 = smul.u32 2, %s18
      %p223 = scmp.lt.s32.totalorder %s222, 3
      %s224 = scalar_select %p223, %s222, 3
      %s225 = smul.addr %s224, 4
      %s226 = scalar_lea.vmem %s0, %s225
      %p227 = pneg %p39
      %p228 = pneg %p36
      %p229 = pneg %p60
      %p230 = pneg %p57
      %p231 = pneg %p81
      %p232 = pneg %p78
      %p233 = pneg %p102
      %p234 = pneg %p99
      %p235 = pneg %p123
      %p236 = pneg %p120
      %p237 = pneg %p149
      %p238 = pneg %p146
      %s239 = smul.u32 2, %s18
      %p240 = scmp.lt.s32.totalorder %s239, 3
      %s241 = scalar_select %p240, %s239, 3
      %s242 = smul.addr %s241, 4
      %s243 = scalar_lea.vmem %s5, %s242
      %p244 = pneg %p175
      %p245 = pneg %p172
      %p246 = scmp.lt.s32.totalorder %s18, 1
      %s247 = scalar_select %p246, %s18, 1
      %s248 = smul.addr %s247, 8
      %s249 = scalar_lea.vmem %s6, %s248
      %s250 = smul.u32 2, %s18
      %p251 = scmp.lt.s32.totalorder %s250, 3
      %s252 = scalar_select %p251, %s250, 3
      %s253 = smul.addr %s252, 4
      %s254 = scalar_lea.vmem %s0, %s253
      %s255 = smul.u32 2, %s18
      %s256 = smul.u32 2, %s18
      %p257 = scmp.lt.s32.totalorder %s256, 3
      %s258 = scalar_select %p257, %s256, 3
      %s259 = smul.addr %s258, 4
      %s260 = scalar_lea.vmem %s5, %s259
      %s261 = smul.u32 2, %s18
      %p262 = scmp.lt.s32.totalorder %s18, 1
      %s263 = scalar_select %p262, %s18, 1
      %s264 = smul.addr %s263, 8
      %s265 = scalar_lea.vmem %s6, %s264
      %v267 = vld [vmem:[%s254] sm:$0xf]
      %v268 = vld [vmem:[%s254 + $0x4] sm:$0xf]
      %v269 = vunpack.c.l.bf16 %v267
      %v270 = vunpack.c.l.bf16 %v268
      %v271 = vlaneseq
      %v272 = vshrl.u32 %v271, 7
      %v273 = vadd.s32 %v272, 8
      %vm274 = vcmp.lt.s32.totalorder %v272, 0
      %v275 = vsub.s32 0, %v272
      %v276 = vsel %vm274, %v275, %v272
      %v277 = vshrl.u32 %v276, 4
      %v278 = vand.u32 %v276, 15
      %v279 = vsub.s32 0, %v278
      %v280 = vsel %vm274, %v279, %v278
      %vm281 = vcmp.lt.s32.totalorder %v273, 0
      %v282 = vsub.s32 0, %v273
      %v283 = vsel %vm281, %v282, %v273
      %v284 = vshrl.u32 %v283, 4
      %v285 = vand.u32 %v283, 15
      %v286 = vsub.s32 0, %v285
      %v287 = vsel %vm281, %v286, %v285
      %vm288 = vcmp.ne.s32.totalorder %v280, 0
      %vm289 = vcmp.ne.s32.totalorder %v287, 0
      %vm290 = vcmp.lt.s32.totalorder %v280, 0
      %vm291 = vcmp.lt.s32.totalorder %v287, 0
      %vm292 = vmand %vm290, %vm288
      %vm293 = vmand %vm291, %vm289
      %v294 = vadd.s32 %v280, 16
      %v295 = vadd.s32 %v287, 16
      %v296 = vsel %vm292, %v294, %v280
      %v297 = vsel %vm293, %v295, %v287
      %vm298 = vcmp.ne.s32.totalorder %v296, 0
      %vm299 = vcmp.ne.s32.totalorder %v297, 0
      %vm300 = vcmp.ne.s32.totalorder %v296, 15
      %vm301 = vcmp.ne.s32.totalorder %v297, 15
      %vm302 = vcmp.lt.s32.totalorder %v296, 16
      %vm303 = vcmp.lt.s32.totalorder %v297, 16
      %v304 = vrot.slane %v269, 7
      %v305 = vrot.slane %v270, 7
      %vm306 = vcmp.lt.s32.totalorder %v272, 1
      %v307 = vsel %vm306, %v304, %v305
      %v308 = vsel %vm306, %v305, %v304
      %v309 = vsel %vm298, 1, 0
      %v310 = vsel %vm299, 1, 0
      %vm311 = vcmp.eq.s32.totalorder %v309, 1
      %vm312 = vcmp.eq.s32.totalorder %v310, 1
      %v313 = vsel %vm311, %v308, 0.0
      %v314 = vsel %vm312, %v307, 0.0
      %v315 = vpack.c.bf16 %v314, %v313
      %v316 = vrot.slane %v269, 1
      %v317 = vrot.slane %v270, 1
      %vm318 = vcmp.lt.s32.totalorder %v272, 7
      %v319 = vsel %vm318, %v316, %v317
      %v320 = vsel %vm318, %v317, %v316
      %v321 = vsel %vm300, 1, 0
      %v322 = vsel %vm301, 1, 0
      %vm323 = vcmp.eq.s32.totalorder %v321, 1
      %vm324 = vcmp.eq.s32.totalorder %v322, 1
      %v325 = vsel %vm323, %v319, 0.0
      %v326 = vsel %vm324, %v320, 0.0
      %v327 = vpack.c.bf16 %v326, %v325
      %v328 = vld [vmem:[%s3 + $0x40] sm:$0xf]
      %v329 = vld [vmem:[%s3 + $0x44] sm:$0xf]
      %v330 = vld [vmem:[%s3 + $0x48] sm:$0xf]
      %v331 = vld [vmem:[%s3 + $0x4c] sm:$0xf]
      %v332 = vld [vmem:[%s3 + $0x50] sm:$0xf]
      %v333 = vld [vmem:[%s3 + $0x54] sm:$0xf]
      %v334 = vld [vmem:[%s3 + $0x58] sm:$0xf]
      %v335 = vld [vmem:[%s3 + $0x5c] sm:$0xf]
      %v336 = vld [vmem:[%s3 + $0x60] sm:$0xf]
      %v337 = vld [vmem:[%s3 + $0x64] sm:$0xf]
      %v338 = vld [vmem:[%s3 + $0x68] sm:$0xf]
      %v339 = vld [vmem:[%s3 + $0x6c] sm:$0xf]
      %v340 = vld [vmem:[%s3 + $0x70] sm:$0xf]
      %v341 = vld [vmem:[%s3 + $0x74] sm:$0xf]
      %v342 = vld [vmem:[%s3 + $0x78] sm:$0xf]
      %v343 = vld [vmem:[%s3 + $0x7c] sm:$0xf]
      %v344 = vld [vmem:[%s3] sm:$0xf]
      %v345 = vld [vmem:[%s3 + $0x4] sm:$0xf]
      %v346 = vld [vmem:[%s3 + $0x8] sm:$0xf]
      %v347 = vld [vmem:[%s3 + $0xc] sm:$0xf]
      %v348 = vld [vmem:[%s3 + $0x10] sm:$0xf]
      %v349 = vld [vmem:[%s3 + $0x14] sm:$0xf]
      %v350 = vld [vmem:[%s3 + $0x18] sm:$0xf]
      %v351 = vld [vmem:[%s3 + $0x1c] sm:$0xf]
      %v352 = vld [vmem:[%s3 + $0x20] sm:$0xf]
      %v353 = vld [vmem:[%s3 + $0x24] sm:$0xf]
      %v354 = vld [vmem:[%s3 + $0x28] sm:$0xf]
      %v355 = vld [vmem:[%s3 + $0x2c] sm:$0xf]
      %v356 = vld [vmem:[%s3 + $0x30] sm:$0xf]
      %v357 = vld [vmem:[%s3 + $0x34] sm:$0xf]
      %v358 = vld [vmem:[%s3 + $0x38] sm:$0xf]
      %v359 = vld [vmem:[%s3 + $0x3c] sm:$0xf]
      %v376 = vunpack.c.l.b16 %v344
      %v377 = vunpack.c.l.b16 %v345
      %v378 = vunpack.c.l.b16 %v346
      %v379 = vunpack.c.l.b16 %v347
      %v380 = vunpack.c.l.b16 %v348
      %v381 = vunpack.c.l.b16 %v349
      %v382 = vunpack.c.l.b16 %v350
      %v383 = vunpack.c.l.b16 %v351
      %v384 = vunpack.c.l.b16 %v352
      %v385 = vunpack.c.l.b16 %v353
      %v386 = vunpack.c.l.b16 %v354
      %v387 = vunpack.c.l.b16 %v355
      %v388 = vunpack.c.l.b16 %v356
      %v389 = vunpack.c.l.b16 %v357
      %v390 = vunpack.c.l.b16 %v358
      %v391 = vunpack.c.l.b16 %v359
      %v392 = vpack.c.b16 %v377, %v376
      %v393 = vpack.c.b16 %v379, %v378
      %v394 = vpack.c.b16 %v381, %v380
      %v395 = vpack.c.b16 %v383, %v382
      %v396 = vpack.c.b16 %v385, %v384
      %v397 = vpack.c.b16 %v387, %v386
      %v398 = vpack.c.b16 %v389, %v388
      %v399 = vpack.c.b16 %v391, %v390
      %408 = vmatprep.subr.bf16.mxu0 0
      %409 = vmatpush1.bf16.msra.mxu0 %v399
      %410 = vmatprep.subr.bf16.mxu0 0
      %411 = vmatpush1.bf16.msra.mxu0 %v398
      %412 = vmatprep.subr.bf16.mxu0 0
      %413 = vmatpush1.bf16.msra.mxu0 %v397
      %414 = vmatprep.subr.bf16.mxu0 0
      %415 = vmatpush1.bf16.msra.mxu0 %v396
      %416 = vmatprep.subr.bf16.mxu0 0
      %417 = vmatpush1.bf16.msra.mxu0 %v395
      %418 = vmatprep.subr.bf16.mxu0 0
      %419 = vmatpush1.bf16.msra.mxu0 %v394
      %420 = vmatprep.subr.bf16.mxu0 0
      %421 = vmatpush1.bf16.msra.mxu0 %v393
      %422 = vmatprep.subr.bf16.mxu0 0
      %423 = vmatpush1.bf16.msra.mxu0 %v392
      %424 = vmatprep.subr.bf16.mxu0 0
      %425 = vmatpush2.bf16.msra.mxu0 0
      %426 = vmatprep.subr.bf16.mxu0 0
      %427 = vmatpush2.bf16.msra.mxu0 0
      %428 = vmatprep.subr.bf16.mxu0 0
      %429 = vmatpush2.bf16.msra.mxu0 0
      %430 = vmatprep.subr.bf16.mxu0 0
      %431 = vmatpush2.bf16.msra.mxu0 0
      %432 = vmatprep.subr.bf16.mxu0 0
      %433 = vmatpush2.bf16.msra.mxu0 0
      %434 = vmatprep.subr.bf16.mxu0 0
      %435 = vmatpush2.bf16.msra.mxu0 0
      %436 = vmatprep.subr.bf16.mxu0 0
      %437 = vmatpush2.bf16.msra.mxu0 0
      %438 = vmatprep.subr.bf16.mxu0 0
      %439 = vmatpush2.bf16.msra.mxu0 0
      %440 = vmatprep.mubr.bf16.mxu0 0
      %441 = vmatmul.mubr.bf16.gmra.mxu0 %v315
      %v442 = vpop.f32.mrf.mxu0
      %v443 = vadd.f32 0.0, %v442
      %v444 = vpop.f32.mrf.mxu0
      %v445 = vpop.f32.mrf.mxu0
      %v446 = vadd.f32 0.0, %v445
      %v447 = vpop.f32.mrf.mxu0
      %448 = vdwg.mxu0
      %v451 = vunpack.c.l.b16 %v267
      %v452 = vunpack.c.l.b16 %v268
      %v453 = vpack.c.b16 %v452, %v451
      %v471 = vunpack.c.l.b16 %v328
      %v472 = vunpack.c.l.b16 %v329
      %v473 = vunpack.c.l.b16 %v330
      %v474 = vunpack.c.l.b16 %v331
      %v475 = vunpack.c.l.b16 %v332
      %v476 = vunpack.c.l.b16 %v333
      %v477 = vunpack.c.l.b16 %v334
      %v478 = vunpack.c.l.b16 %v335
      %v479 = vunpack.c.l.b16 %v336
      %v480 = vunpack.c.l.b16 %v337
      %v481 = vunpack.c.l.b16 %v338
      %v482 = vunpack.c.l.b16 %v339
      %v483 = vunpack.c.l.b16 %v340
      %v484 = vunpack.c.l.b16 %v341
      %v485 = vunpack.c.l.b16 %v342
      %v486 = vunpack.c.l.b16 %v343
      %v487 = vpack.c.b16 %v472, %v471
      %v488 = vpack.c.b16 %v474, %v473
      %v489 = vpack.c.b16 %v476, %v475
      %v490 = vpack.c.b16 %v478, %v477
      %v491 = vpack.c.b16 %v480, %v479
      %v492 = vpack.c.b16 %v482, %v481
      %v493 = vpack.c.b16 %v484, %v483
      %v494 = vpack.c.b16 %v486, %v485
      %503 = vmatprep.subr.bf16.mxu0 0
      %504 = vmatpush1.bf16.msra.mxu0 %v494
      %505 = vmatprep.subr.bf16.mxu0 0
      %506 = vmatpush1.bf16.msra.mxu0 %v493
      %507 = vmatprep.subr.bf16.mxu0 0
      %508 = vmatpush1.bf16.msra.mxu0 %v492
      %509 = vmatprep.subr.bf16.mxu0 0
      %510 = vmatpush1.bf16.msra.mxu0 %v491
      %511 = vmatprep.subr.bf16.mxu0 0
      %512 = vmatpush1.bf16.msra.mxu0 %v490
      %513 = vmatprep.subr.bf16.mxu0 0
      %514 = vmatpush1.bf16.msra.mxu0 %v489
      %515 = vmatprep.subr.bf16.mxu0 0
      %516 = vmatpush1.bf16.msra.mxu0 %v488
      %517 = vmatprep.subr.bf16.mxu0 0
      %518 = vmatpush1.bf16.msra.mxu0 %v487
      %519 = vmatprep.subr.bf16.mxu0 0
      %520 = vmatpush2.bf16.msra.mxu0 0
      %521 = vmatprep.subr.bf16.mxu0 0
      %522 = vmatpush2.bf16.msra.mxu0 0
      %523 = vmatprep.subr.bf16.mxu0 0
      %524 = vmatpush2.bf16.msra.mxu0 0
      %525 = vmatprep.subr.bf16.mxu0 0
      %526 = vmatpush2.bf16.msra.mxu0 0
      %527 = vmatprep.subr.bf16.mxu0 0
      %528 = vmatpush2.bf16.msra.mxu0 0
      %529 = vmatprep.subr.bf16.mxu0 0
      %530 = vmatpush2.bf16.msra.mxu0 0
      %531 = vmatprep.subr.bf16.mxu0 0
      %532 = vmatpush2.bf16.msra.mxu0 0
      %533 = vmatprep.subr.bf16.mxu0 0
      %534 = vmatpush2.bf16.msra.mxu0 0
      %535 = vmatprep.mubr.bf16.mxu0 0
      %536 = vmatmul.mubr.bf16.gmra.mxu0 %v453
      %v537 = vpop.f32.mrf.mxu0
      %v538 = vadd.f32 %v443, %v537
      %v539 = vpop.f32.mrf.mxu0
      %v540 = vpop.f32.mrf.mxu0
      %v541 = vadd.f32 %v446, %v540
      %v542 = vpop.f32.mrf.mxu0
      %543 = vdwg.mxu0
      %v544 = vld [vmem:[%s3 + $0x80] sm:$0xf]
      %v545 = vld [vmem:[%s3 + $0x84] sm:$0xf]
      %v546 = vld [vmem:[%s3 + $0x88] sm:$0xf]
      %v547 = vld [vmem:[%s3 + $0x8c] sm:$0xf]
      %v548 = vld [vmem:[%s3 + $0x90] sm:$0xf]
      %v549 = vld [vmem:[%s3 + $0x94] sm:$0xf]
      %v550 = vld [vmem:[%s3 + $0x98] sm:$0xf]
      %v551 = vld [vmem:[%s3 + $0x9c] sm:$0xf]
      %v552 = vld [vmem:[%s3 + $0xa0] sm:$0xf]
      %v553 = vld [vmem:[%s3 + $0xa4] sm:$0xf]
      %v554 = vld [vmem:[%s3 + $0xa8] sm:$0xf]
      %v555 = vld [vmem:[%s3 + $0xac] sm:$0xf]
      %v556 = vld [vmem:[%s3 + $0xb0] sm:$0xf]
      %v557 = vld [vmem:[%s3 + $0xb4] sm:$0xf]
      %v558 = vld [vmem:[%s3 + $0xb8] sm:$0xf]
      %v559 = vld [vmem:[%s3 + $0xbc] sm:$0xf]
      %v576 = vunpack.c.l.b16 %v544
      %v577 = vunpack.c.l.b16 %v545
      %v578 = vunpack.c.l.b16 %v546
      %v579 = vunpack.c.l.b16 %v547
      %v580 = vunpack.c.l.b16 %v548
      %v581 = vunpack.c.l.b16 %v549
      %v582 = vunpack.c.l.b16 %v550
      %v583 = vunpack.c.l.b16 %v551
      %v584 = vunpack.c.l.b16 %v552
      %v585 = vunpack.c.l.b16 %v553
      %v586 = vunpack.c.l.b16 %v554
      %v587 = vunpack.c.l.b16 %v555
      %v588 = vunpack.c.l.b16 %v556
      %v589 = vunpack.c.l.b16 %v557
      %v590 = vunpack.c.l.b16 %v558
      %v591 = vunpack.c.l.b16 %v559
      %v592 = vpack.c.b16 %v577, %v576
      %v593 = vpack.c.b16 %v579, %v578
      %v594 = vpack.c.b16 %v581, %v580
      %v595 = vpack.c.b16 %v583, %v582
      %v596 = vpack.c.b16 %v585, %v584
      %v597 = vpack.c.b16 %v587, %v586
      %v598 = vpack.c.b16 %v589, %v588
      %v599 = vpack.c.b16 %v591, %v590
      %608 = vmatprep.subr.bf16.mxu0 0
      %609 = vmatpush1.bf16.msra.mxu0 %v599
      %610 = vmatprep.subr.bf16.mxu0 0
      %611 = vmatpush1.bf16.msra.mxu0 %v598
      %612 = vmatprep.subr.bf16.mxu0 0
      %613 = vmatpush1.bf16.msra.mxu0 %v597
      %614 = vmatprep.subr.bf16.mxu0 0
      %615 = vmatpush1.bf16.msra.mxu0 %v596
      %616 = vmatprep.subr.bf16.mxu0 0
      %617 = vmatpush1.bf16.msra.mxu0 %v595
      %618 = vmatprep.subr.bf16.mxu0 0
      %619 = vmatpush1.bf16.msra.mxu0 %v594
      %620 = vmatprep.subr.bf16.mxu0 0
      %621 = vmatpush1.bf16.msra.mxu0 %v593
      %622 = vmatprep.subr.bf16.mxu0 0
      %623 = vmatpush1.bf16.msra.mxu0 %v592
      %624 = vmatprep.subr.bf16.mxu0 0
      %625 = vmatpush2.bf16.msra.mxu0 0
      %626 = vmatprep.subr.bf16.mxu0 0
      %627 = vmatpush2.bf16.msra.mxu0 0
      %628 = vmatprep.subr.bf16.mxu0 0
      %629 = vmatpush2.bf16.msra.mxu0 0
      %630 = vmatprep.subr.bf16.mxu0 0
      %631 = vmatpush2.bf16.msra.mxu0 0
      %632 = vmatprep.subr.bf16.mxu0 0
      %633 = vmatpush2.bf16.msra.mxu0 0
      %634 = vmatprep.subr.bf16.mxu0 0
      %635 = vmatpush2.bf16.msra.mxu0 0
      %636 = vmatprep.subr.bf16.mxu0 0
      %637 = vmatpush2.bf16.msra.mxu0 0
      %638 = vmatprep.subr.bf16.mxu0 0
      %639 = vmatpush2.bf16.msra.mxu0 0
      %640 = vmatprep.mubr.bf16.mxu0 0
      %641 = vmatmul.mubr.bf16.gmra.mxu0 %v327
      %v642 = vpop.f32.mrf.mxu0
      %v643 = vadd.f32 0.0, %v642
      %v644 = vpop.f32.mrf.mxu0
      %v645 = vpop.f32.mrf.mxu0
      %v646 = vadd.f32 0.0, %v645
      %v647 = vpop.f32.mrf.mxu0
      %648 = vdwg.mxu0
      %v649 = vadd.f32 %v538, %v643
      %v650 = vadd.f32 %v541, %v646
      %v651 = vld [vmem:[%s1] sm:$0x1]
      %v653 = vlaneseq
      %v654 = vshrl.u32 %v653, 7
      %v655 = vsub.s32 0, %v654
      %v656 = vrot.slane %v651, %v655
      %v658 = vmul.f32 %v649, %v656
      %v659 = vmul.f32 %v650, %v656
      %v660 = vld [vmem:[%s2] sm:$0x1]
      %v662 = vlaneseq
      %v663 = vshrl.u32 %v662, 7
      %v664 = vsub.s32 0, %v663
      %v665 = vrot.slane %v660, %v664
      %v667 = vadd.f32 %v658, %v665
      %v668 = vadd.f32 %v659, %v665
      %v669 = vmax.f32 %v667, 0.0
      %v670 = vmax.f32 %v668, 0.0
      %v671 = vpack.c.bf16 %v670, %v669
      %v672 = vrot.slane %v669, 7
      %v673 = vrot.slane %v670, 7
      %v674 = vsel %vm306, %v672, %v673
      %v675 = vsel %vm306, %v673, %v672
      %v676 = vsel %vm311, %v675, 0.0
      %v677 = vsel %vm312, %v674, 0.0
      %v678 = vpack.c.bf16 %v677, %v676
      %v679 = vrot.slane %v669, 1
      %v680 = vrot.slane %v670, 1
      %v681 = vsel %vm318, %v679, %v680
      %v682 = vsel %vm318, %v680, %v679
      %v683 = vsel %vm323, %v681, 0.0
      %v684 = vsel %vm324, %v682, 0.0
      %v685 = vpack.c.bf16 %v684, %v683
      %v686 = vld [vmem:[%s4 + $0x40] sm:$0xf]
      %v687 = vld [vmem:[%s4 + $0x44] sm:$0xf]
      %v688 = vld [vmem:[%s4 + $0x48] sm:$0xf]
      %v689 = vld [vmem:[%s4 + $0x4c] sm:$0xf]
      %v690 = vld [vmem:[%s4 + $0x50] sm:$0xf]
      %v691 = vld [vmem:[%s4 + $0x54] sm:$0xf]
      %v692 = vld [vmem:[%s4 + $0x58] sm:$0xf]
      %v693 = vld [vmem:[%s4 + $0x5c] sm:$0xf]
      %v694 = vld [vmem:[%s4 + $0x60] sm:$0xf]
      %v695 = vld [vmem:[%s4 + $0x64] sm:$0xf]
      %v696 = vld [vmem:[%s4 + $0x68] sm:$0xf]
      %v697 = vld [vmem:[%s4 + $0x6c] sm:$0xf]
      %v698 = vld [vmem:[%s4 + $0x70] sm:$0xf]
      %v699 = vld [vmem:[%s4 + $0x74] sm:$0xf]
      %v700 = vld [vmem:[%s4 + $0x78] sm:$0xf]
      %v701 = vld [vmem:[%s4 + $0x7c] sm:$0xf]
      %v702 = vld [vmem:[%s4] sm:$0xf]
      %v703 = vld [vmem:[%s4 + $0x4] sm:$0xf]
      %v704 = vld [vmem:[%s4 + $0x8] sm:$0xf]
      %v705 = vld [vmem:[%s4 + $0xc] sm:$0xf]
      %v706 = vld [vmem:[%s4 + $0x10] sm:$0xf]
      %v707 = vld [vmem:[%s4 + $0x14] sm:$0xf]
      %v708 = vld [vmem:[%s4 + $0x18] sm:$0xf]
      %v709 = vld [vmem:[%s4 + $0x1c] sm:$0xf]
      %v710 = vld [vmem:[%s4 + $0x20] sm:$0xf]
      %v711 = vld [vmem:[%s4 + $0x24] sm:$0xf]
      %v712 = vld [vmem:[%s4 + $0x28] sm:$0xf]
      %v713 = vld [vmem:[%s4 + $0x2c] sm:$0xf]
      %v714 = vld [vmem:[%s4 + $0x30] sm:$0xf]
      %v715 = vld [vmem:[%s4 + $0x34] sm:$0xf]
      %v716 = vld [vmem:[%s4 + $0x38] sm:$0xf]
      %v717 = vld [vmem:[%s4 + $0x3c] sm:$0xf]
      %v734 = vunpack.c.l.b16 %v702
      %v735 = vunpack.c.l.b16 %v703
      %v736 = vunpack.c.l.b16 %v704
      %v737 = vunpack.c.l.b16 %v705
      %v738 = vunpack.c.l.b16 %v706
      %v739 = vunpack.c.l.b16 %v707
      %v740 = vunpack.c.l.b16 %v708
      %v741 = vunpack.c.l.b16 %v709
      %v742 = vunpack.c.l.b16 %v710
      %v743 = vunpack.c.l.b16 %v711
      %v744 = vunpack.c.l.b16 %v712
      %v745 = vunpack.c.l.b16 %v713
      %v746 = vunpack.c.l.b16 %v714
      %v747 = vunpack.c.l.b16 %v715
      %v748 = vunpack.c.l.b16 %v716
      %v749 = vunpack.c.l.b16 %v717
      %v750 = vpack.c.b16 %v735, %v734
      %v751 = vpack.c.b16 %v737, %v736
      %v752 = vpack.c.b16 %v739, %v738
      %v753 = vpack.c.b16 %v741, %v740
      %v754 = vpack.c.b16 %v743, %v742
      %v755 = vpack.c.b16 %v745, %v744
      %v756 = vpack.c.b16 %v747, %v746
      %v757 = vpack.c.b16 %v749, %v748
      %766 = vmatprep.subr.bf16.mxu0 0
      %767 = vmatpush1.bf16.msra.mxu0 %v757
      %768 = vmatprep.subr.bf16.mxu0 0
      %769 = vmatpush1.bf16.msra.mxu0 %v756
      %770 = vmatprep.subr.bf16.mxu0 0
      %771 = vmatpush1.bf16.msra.mxu0 %v755
      %772 = vmatprep.subr.bf16.mxu0 0
      %773 = vmatpush1.bf16.msra.mxu0 %v754
      %774 = vmatprep.subr.bf16.mxu0 0
      %775 = vmatpush1.bf16.msra.mxu0 %v753
      %776 = vmatprep.subr.bf16.mxu0 0
      %777 = vmatpush1.bf16.msra.mxu0 %v752
      %778 = vmatprep.subr.bf16.mxu0 0
      %779 = vmatpush1.bf16.msra.mxu0 %v751
      %780 = vmatprep.subr.bf16.mxu0 0
      %781 = vmatpush1.bf16.msra.mxu0 %v750
      %782 = vmatprep.subr.bf16.mxu0 0
      %783 = vmatpush2.bf16.msra.mxu0 0
      %784 = vmatprep.subr.bf16.mxu0 0
      %785 = vmatpush2.bf16.msra.mxu0 0
      %786 = vmatprep.subr.bf16.mxu0 0
      %787 = vmatpush2.bf16.msra.mxu0 0
      %788 = vmatprep.subr.bf16.mxu0 0
      %789 = vmatpush2.bf16.msra.mxu0 0
      %790 = vmatprep.subr.bf16.mxu0 0
      %791 = vmatpush2.bf16.msra.mxu0 0
      %792 = vmatprep.subr.bf16.mxu0 0
      %793 = vmatpush2.bf16.msra.mxu0 0
      %794 = vmatprep.subr.bf16.mxu0 0
      %795 = vmatpush2.bf16.msra.mxu0 0
      %796 = vmatprep.subr.bf16.mxu0 0
      %797 = vmatpush2.bf16.msra.mxu0 0
      %798 = vmatprep.mubr.bf16.mxu0 0
      %799 = vmatmul.mubr.bf16.gmra.mxu0 %v678
      %v800 = vpop.f32.mrf.mxu0
      %v801 = vadd.f32 0.0, %v800
      %v802 = vpop.f32.mrf.mxu0
      %v803 = vpop.f32.mrf.mxu0
      %v804 = vadd.f32 0.0, %v803
      %v805 = vpop.f32.mrf.mxu0
      %806 = vdwg.mxu0
      %v823 = vunpack.c.l.b16 %v686
      %v824 = vunpack.c.l.b16 %v687
      %v825 = vunpack.c.l.b16 %v688
      %v826 = vunpack.c.l.b16 %v689
      %v827 = vunpack.c.l.b16 %v690
      %v828 = vunpack.c.l.b16 %v691
      %v829 = vunpack.c.l.b16 %v692
      %v830 = vunpack.c.l.b16 %v693
      %v831 = vunpack.c.l.b16 %v694
      %v832 = vunpack.c.l.b16 %v695
      %v833 = vunpack.c.l.b16 %v696
      %v834 = vunpack.c.l.b16 %v697
      %v835 = vunpack.c.l.b16 %v698
      %v836 = vunpack.c.l.b16 %v699
      %v837 = vunpack.c.l.b16 %v700
      %v838 = vunpack.c.l.b16 %v701
      %v839 = vpack.c.b16 %v824, %v823
      %v840 = vpack.c.b16 %v826, %v825
      %v841 = vpack.c.b16 %v828, %v827
      %v842 = vpack.c.b16 %v830, %v829
      %v843 = vpack.c.b16 %v832, %v831
      %v844 = vpack.c.b16 %v834, %v833
      %v845 = vpack.c.b16 %v836, %v835
      %v846 = vpack.c.b16 %v838, %v837
      %855 = vmatprep.subr.bf16.mxu0 0
      %856 = vmatpush1.bf16.msra.mxu0 %v846
      %857 = vmatprep.subr.bf16.mxu0 0
      %858 = vmatpush1.bf16.msra.mxu0 %v845
      %859 = vmatprep.subr.bf16.mxu0 0
      %860 = vmatpush1.bf16.msra.mxu0 %v844
      %861 = vmatprep.subr.bf16.mxu0 0
      %862 = vmatpush1.bf16.msra.mxu0 %v843
      %863 = vmatprep.subr.bf16.mxu0 0
      %864 = vmatpush1.bf16.msra.mxu0 %v842
      %865 = vmatprep.subr.bf16.mxu0 0
      %866 = vmatpush1.bf16.msra.mxu0 %v841
      %867 = vmatprep.subr.bf16.mxu0 0
      %868 = vmatpush1.bf16.msra.mxu0 %v840
      %869 = vmatprep.subr.bf16.mxu0 0
      %870 = vmatpush1.bf16.msra.mxu0 %v839
      %871 = vmatprep.subr.bf16.mxu0 0
      %872 = vmatpush2.bf16.msra.mxu0 0
      %873 = vmatprep.subr.bf16.mxu0 0
      %874 = vmatpush2.bf16.msra.mxu0 0
      %875 = vmatprep.subr.bf16.mxu0 0
      %876 = vmatpush2.bf16.msra.mxu0 0
      %877 = vmatprep.subr.bf16.mxu0 0
      %878 = vmatpush2.bf16.msra.mxu0 0
      %879 = vmatprep.subr.bf16.mxu0 0
      %880 = vmatpush2.bf16.msra.mxu0 0
      %881 = vmatprep.subr.bf16.mxu0 0
      %882 = vmatpush2.bf16.msra.mxu0 0
      %883 = vmatprep.subr.bf16.mxu0 0
      %884 = vmatpush2.bf16.msra.mxu0 0
      %885 = vmatprep.subr.bf16.mxu0 0
      %886 = vmatpush2.bf16.msra.mxu0 0
      %887 = vmatprep.mubr.bf16.mxu0 0
      %888 = vmatmul.mubr.bf16.gmra.mxu0 %v671
      %v889 = vpop.f32.mrf.mxu0
      %v890 = vadd.f32 %v801, %v889
      %v891 = vpop.f32.mrf.mxu0
      %v892 = vpop.f32.mrf.mxu0
      %v893 = vadd.f32 %v804, %v892
      %v894 = vpop.f32.mrf.mxu0
      %895 = vdwg.mxu0
      %v896 = vld [vmem:[%s4 + $0x80] sm:$0xf]
      %v897 = vld [vmem:[%s4 + $0x84] sm:$0xf]
      %v898 = vld [vmem:[%s4 + $0x88] sm:$0xf]
      %v899 = vld [vmem:[%s4 + $0x8c] sm:$0xf]
      %v900 = vld [vmem:[%s4 + $0x90] sm:$0xf]
      %v901 = vld [vmem:[%s4 + $0x94] sm:$0xf]
      %v902 = vld [vmem:[%s4 + $0x98] sm:$0xf]
      %v903 = vld [vmem:[%s4 + $0x9c] sm:$0xf]
      %v904 = vld [vmem:[%s4 + $0xa0] sm:$0xf]
      %v905 = vld [vmem:[%s4 + $0xa4] sm:$0xf]
      %v906 = vld [vmem:[%s4 + $0xa8] sm:$0xf]
      %v907 = vld [vmem:[%s4 + $0xac] sm:$0xf]
      %v908 = vld [vmem:[%s4 + $0xb0] sm:$0xf]
      %v909 = vld [vmem:[%s4 + $0xb4] sm:$0xf]
      %v910 = vld [vmem:[%s4 + $0xb8] sm:$0xf]
      %v911 = vld [vmem:[%s4 + $0xbc] sm:$0xf]
      %v928 = vunpack.c.l.b16 %v896
      %v929 = vunpack.c.l.b16 %v897
      %v930 = vunpack.c.l.b16 %v898
      %v931 = vunpack.c.l.b16 %v899
      %v932 = vunpack.c.l.b16 %v900
      %v933 = vunpack.c.l.b16 %v901
      %v934 = vunpack.c.l.b16 %v902
      %v935 = vunpack.c.l.b16 %v903
      %v936 = vunpack.c.l.b16 %v904
      %v937 = vunpack.c.l.b16 %v905
      %v938 = vunpack.c.l.b16 %v906
      %v939 = vunpack.c.l.b16 %v907
      %v940 = vunpack.c.l.b16 %v908
      %v941 = vunpack.c.l.b16 %v909
      %v942 = vunpack.c.l.b16 %v910
      %v943 = vunpack.c.l.b16 %v911
      %v944 = vpack.c.b16 %v929, %v928
      %v945 = vpack.c.b16 %v931, %v930
      %v946 = vpack.c.b16 %v933, %v932
      %v947 = vpack.c.b16 %v935, %v934
      %v948 = vpack.c.b16 %v937, %v936
      %v949 = vpack.c.b16 %v939, %v938
      %v950 = vpack.c.b16 %v941, %v940
      %v951 = vpack.c.b16 %v943, %v942
      %960 = vmatprep.subr.bf16.mxu0 0
      %961 = vmatpush1.bf16.msra.mxu0 %v951
      %962 = vmatprep.subr.bf16.mxu0 0
      %963 = vmatpush1.bf16.msra.mxu0 %v950
      %964 = vmatprep.subr.bf16.mxu0 0
      %965 = vmatpush1.bf16.msra.mxu0 %v949
      %966 = vmatprep.subr.bf16.mxu0 0
      %967 = vmatpush1.bf16.msra.mxu0 %v948
      %968 = vmatprep.subr.bf16.mxu0 0
      %969 = vmatpush1.bf16.msra.mxu0 %v947
      %970 = vmatprep.subr.bf16.mxu0 0
      %971 = vmatpush1.bf16.msra.mxu0 %v946
      %972 = vmatprep.subr.bf16.mxu0 0
      %973 = vmatpush1.bf16.msra.mxu0 %v945
      %974 = vmatprep.subr.bf16.mxu0 0
      %975 = vmatpush1.bf16.msra.mxu0 %v944
      %976 = vmatprep.subr.bf16.mxu0 0
      %977 = vmatpush2.bf16.msra.mxu0 0
      %978 = vmatprep.subr.bf16.mxu0 0
      %979 = vmatpush2.bf16.msra.mxu0 0
      %980 = vmatprep.subr.bf16.mxu0 0
      %981 = vmatpush2.bf16.msra.mxu0 0
      %982 = vmatprep.subr.bf16.mxu0 0
      %983 = vmatpush2.bf16.msra.mxu0 0
      %984 = vmatprep.subr.bf16.mxu0 0
      %985 = vmatpush2.bf16.msra.mxu0 0
      %986 = vmatprep.subr.bf16.mxu0 0
      %987 = vmatpush2.bf16.msra.mxu0 0
      %988 = vmatprep.subr.bf16.mxu0 0
      %989 = vmatpush2.bf16.msra.mxu0 0
      %990 = vmatprep.subr.bf16.mxu0 0
      %991 = vmatpush2.bf16.msra.mxu0 0
      %992 = vmatprep.mubr.bf16.mxu0 0
      %993 = vmatmul.mubr.bf16.gmra.mxu0 %v685
      %v994 = vpop.f32.mrf.mxu0
      %v995 = vadd.f32 0.0, %v994
      %v996 = vpop.f32.mrf.mxu0
      %v997 = vpop.f32.mrf.mxu0
      %v998 = vadd.f32 0.0, %v997
      %v999 = vpop.f32.mrf.mxu0
      %1000 = vdwg.mxu0
      %v1001 = vadd.f32 %v890, %v995
      %v1002 = vadd.f32 %v893, %v998
      %v1003 = vsel %vm302, 1, 0
      %v1004 = vsel %vm303, 1, 0
      %vm1005 = vcmp.eq.s32.totalorder %v1003, 1
      %vm1006 = vcmp.eq.s32.totalorder %v1004, 1
      %v1007 = vsel %vm1005, %v1001, 0.0
      %v1008 = vsel %vm1006, %v1002, 0.0
      %v1009 = vpack.c.bf16 %v1008, %v1007
      %v1011 = vunpack.c.l.b16 %v1009
      %v1012 = vunpack.c.h.b16 %v1009
      %v1013 = vpack.c.b16 %v1011, %v1011
      %v1014 = vpack.c.b16 %v1012, %v1012
      %1017 = vst [vmem:[%s260] sm:$0xf] %v1013
      %1018 = vst [vmem:[%s260 + $0x4] sm:$0xf] %v1014
      %v1019 = vadd.f32 %v1007, %v1008
      %v1020 = vrot.slane %v1019, 4
      %v1021 = vadd.f32 %v1019, %v1020
      %v1022 = vrot.slane %v1021, 2
      %v1023 = vadd.f32 %v1021, %v1022
      %v1024 = vrot.slane %v1023, 1
      %v1025 = vadd.f32 %v1023, %v1024
      %v1026 = vmul.f32 %v1007, %v1007
      %v1027 = vmul.f32 %v1008, %v1008
      %v1028 = vadd.f32 %v1026, %v1027
      %v1029 = vrot.slane %v1028, 4
      %v1030 = vadd.f32 %v1028, %v1029
      %v1031 = vrot.slane %v1030, 2
      %v1032 = vadd.f32 %v1030, %v1031
      %v1033 = vrot.slane %v1032, 1
      %v1034 = vadd.f32 %v1032, %v1033
      %vm1035 = vcmask 1040384
      %v1036 = vsel %vm1035, %v1025, %v1034
      %vm1037 = vcmask 1041408
      %v1038 = vsel %vm1037, %v1036, 0.0
      %1039 = vst [vmem:[%s265] sm:$0xff] %v1038
      %s1040 = smul.u32 2, %s18
      %p1041 = scmp.lt.s32.totalorder %s1040, 3
      %s1042 = scalar_select %p1041, %s1040, 3
      %s1043 = smul.addr %s1042, 4
      %s1044 = scalar_lea.vmem %s5, %s1043
      %p1045 = scmp.lt.s32.totalorder %s18, 1
      %s1046 = scalar_select %p1045, %s18, 1
      %s1047 = smul.addr %s1046, 8
      %s1048 = scalar_lea.vmem %s6, %s1047
      // Predicated region
      $region41: #{residual_block_pallas.4} parent=39 // pred_check
        %p1049 = pneg %p146
      $region42: #{residual_block_pallas.4} parent=39 // pred_check_branch
        %1051 = sbr.rel (%p1049) target = $region44
      $region43: #{residual_block_pallas.4} parent=39 // pred_region
        %s1052 = smul.u32 2, %s18
      $region44: #{residual_block_pallas.4} parent=39 // pred_fallthru
        _
      // Predicated region
      $region45: #{residual_block_pallas.4} parent=39 // pred_check
        %p1053 = pneg %p172
      $region46: #{residual_block_pallas.4} parent=39 // pred_check_branch
        %1055 = sbr.rel (%p1053) target = $region48
      $region47: #{residual_block_pallas.4} parent=39 // pred_region
        _
      $region48: #{residual_block_pallas.4} parent=39 // pred_fallthru
        _
    $region40: #{residual_block_pallas.4} parent=5 // pred_fallthru
      _
    %p1056 = scmp.le.s32.totalorder 2, %s13
    // Predicated region
    $region49: #{residual_block_pallas.4} parent=5 // pred_check
      %p1057 = pneg %p1056
    $region50: #{residual_block_pallas.4} parent=5 // pred_check_branch
      %1059 = sbr.rel (%p1057) target = $region52
    $region51: #{residual_block_pallas.4} parent=5 // pred_region
      %s1060 = ssub.s32 %s13, 2
      // Predicated region
      $region53: #{residual_block_pallas.4} parent=51 // pred_check
        %p1061 = pneg %p152
      $region54: #{residual_block_pallas.4} parent=51 // pred_check_branch
        %1063 = sbr.rel (%p1061) target = $region56
      $region55: #{residual_block_pallas.4} parent=51 // pred_region
        %s1064 = smul.u32 2, %s19
        %p1065 = scmp.lt.s32.totalorder %s1064, 3
        %s1066 = scalar_select %p1065, %s1064, 3
        %s1067 = smul.addr %s1066, 4
        %s1068 = scalar_lea.vmem %s5, %s1067
      $region56: #{residual_block_pallas.4} parent=51 // pred_fallthru
        _
      // Predicated region
      $region57: #{residual_block_pallas.4} parent=51 // pred_check
        %p1069 = pneg %p178
      $region58: #{residual_block_pallas.4} parent=51 // pred_check_branch
        %1071 = sbr.rel (%p1069) target = $region60
      $region59: #{residual_block_pallas.4} parent=51 // pred_region
        %p1072 = scmp.lt.s32.totalorder %s19, 1
        %s1073 = scalar_select %p1072, %s19, 1
        %s1074 = smul.addr %s1073, 8
        %s1075 = scalar_lea.vmem %s6, %s1074
      $region60: #{residual_block_pallas.4} parent=51 // pred_fallthru
        _
    $region52: #{residual_block_pallas.4} parent=5 // pred_fallthru
      _
  $region6: #{residual_block_pallas.4} parent=0 // loop_footer
    %s17 = sadd.s32 1, %s13
  $region7: #{residual_block_pallas.4} parent=0 // loop_footer_branch
    %12 = sbr.rel target = $region3
  $region8: #{residual_block_pallas.4} parent=0 // loop_exit
    _

</llo_original>
